<compile_context>
chip_gen: v7x
topology: tpu7x:2x2x1
jax: 0.10.0
libtpu: 0.0.40
codegen_flags: <defaults>
</compile_context>

<pallas_src>
import functools

import jax
import jax.numpy as jnp
from jax.experimental import pallas as pl
from jax.experimental.pallas import tpu as pltpu

_LANES = 128


def _round_up(x, m):
    return (x + m - 1) // m * m


def _pick_chunk(T, max_chunk=8):
    """Largest divisor of T that is <= max_chunk (time steps unrolled per grid iter)."""
    for tb in range(min(T, max_chunk), 0, -1):
        if T % tb == 0:
            return tb
    return 1


def _slab_layout(H, S, O):
    """Row layout of the packed 128-lane weight slab.

    Weights sharing a matmul LHS are lane-concatenated into one RHS group so each
    group is a single MXU push:
      Gx  : x  @ [Wa_x | Wc_x]                   (H, S+H)
      Gh  : h  @ [Wa_h | Whh_r | Whh_z | Whh_n]  (H, S+3H)
      Gxt : xt @ [Wih_r | Wih_z | Wih_n]         (H, 3H)
      Wca : applied @ Wc_a                       (H, H)
      Wout: h_new @ W_out                        (H, O)
    Grouped biases (one row each, all in a single 8-row block):
      bGx  = [attn_b | comb_b]
      bGh  = [0_S | 0_H | 0_H | bhh_n]
      bGxt = [bih_r+bhh_r | bih_z+bhh_z | bih_n]
      bout = [out_b]
    Blocks are zero-padded to the full 128 lanes (unmasked loads, N=128 matmuls).
    Returns (layout {name: (row, nrows, ncols)}, total_rows, lanes).
    """
    assert S + 3 * H <= _LANES, "fused GRU/attn RHS group must fit in 128 lanes"
    assert O + S <= _LANES, "packed per-step output must fit in 128 lanes"
    layout = {}
    row = 0

    def add(name, nrows, ncols):
        nonlocal row
        layout[name] = (row, nrows, ncols)
        row = _round_up(row + nrows, 8)

    add("Gx", H, S + H)
    add("Gh", H, S + 3 * H)
    add("Gxt", H, 3 * H)
    add("Wca", H, H)
    add("Wout", H, O)
    bias_row = row
    for i, (name, ncols) in enumerate(
            [("bGx", S + H), ("bGh", S + 3 * H), ("bGxt", 3 * H), ("bout", O)]):
        layout[name] = (bias_row + i, 1, ncols)
    row = bias_row + 8
    return layout, row, _LANES


def _make_decoder_kernel(layout, H, S, O, TB):
    def kernel(x_ref, h0_ref, enc_ref, w_ref, packed_ref, h_ref):
        c = pl.program_id(0)

        # h_ref (constant index map -> resident in VMEM) carries hidden across chunks.
        @pl.when(c == 0)
        def _init():
            h_ref[...] = h0_ref[...]

        def W(name):
            r, nr, _ = layout[name]
            return w_ref[r:r + nr, :]          # full 128 lanes -> unmasked load

        B = x_ref.shape[1]
        enc = enc_ref[...]                     # (B, S, H), resident across the call
        pad = _LANES - O - S
        zpad = jnp.zeros((B, pad), jnp.float32) if pad else None
        h = h_ref[...]                         # (B, H), carried across inner steps

        for i in range(TB):                    # TB time steps unrolled per grid iter
            x = x_ref[i]                       # (B, H)

            # Fused shared-LHS matmuls (one MXU push each, 128-lane RHS).
            gx = jnp.dot(x, W("Gx"), preferred_element_type=jnp.float32) + W("bGx")
            gh = jnp.dot(h, W("Gh"), preferred_element_type=jnp.float32) + W("bGh")

            # attn_weights = softmax(attn(cat(x, h)))
            logits = gx[:, 0:S] + gh[:, 0:S]                          # (B, S)
            m = jnp.max(logits, axis=1, keepdims=True)
            e = jnp.exp(logits - m)
            attn_w = e / jnp.sum(e, axis=1, keepdims=True)            # (B, S)

            # attn_applied = bmm(attn_w, enc): one batched MXU contraction.
            applied = jnp.einsum("bqs,bsh->bqh", attn_w[:, None, :], enc,
                                 preferred_element_type=jnp.float32)[:, 0, :]

            # GRU input = relu(attn_combine(cat(x, attn_applied)))
            comb = gx[:, S:S + H] + jnp.dot(
                applied, W("Wca"), preferred_element_type=jnp.float32)[:, 0:H]
            xt = jnp.maximum(comb, 0.0)                               # (B, H)

            # Single GRU step, PyTorch gate order (r, z, n); per-gate lane slices
            # of the fused (B, 128) results.
            gxt = jnp.dot(xt, W("Gxt"), preferred_element_type=jnp.float32) + W("bGxt")
            r = jax.nn.sigmoid(gxt[:, 0:H] + gh[:, S:S + H])
            z = jax.nn.sigmoid(gxt[:, H:2 * H] + gh[:, S + H:S + 2 * H])
            n = jnp.tanh(gxt[:, 2 * H:3 * H] + r * gh[:, S + 2 * H:S + 3 * H])
            h = (1.0 - z) * n + z * h                                 # (B, H)

            # output = relu(out(h_new)); Wout/bout are zero-padded to 128 lanes so
            # lanes >= O are relu(0) = 0.  Pack [out | attn_w | 0] into one
            # lane-dense 128-wide row -> single unmasked store per step.
            o128 = jnp.maximum(
                jnp.dot(h, W("Wout"), preferred_element_type=jnp.float32)
                + W("bout"), 0.0)                                     # (B, 128)
            pieces = [o128[:, 0:O], attn_w] + ([zpad] if pad else [])
            packed_ref[i] = jnp.concatenate(pieces, axis=1)           # (B, 128)

        h_ref[...] = h

    return kernel


def _decoder_pallas(w_slab, inputs, h0, enc_bsh, output_size):
    """Run T decoder steps in one pallas_call.

    inputs: (T, B, H) f32, h0: (B, H) f32, enc_bsh: (B, S, H) f32, w_slab packed f32.
    Returns (outputs (T,B,O), h_final (B,H), attn_weights (T,B,S)).
    """
    T, B, H = inputs.shape
    S = enc_bsh.shape[1]
    O = output_size
    layout, rows, lanes = _slab_layout(H, S, O)
    assert w_slab.shape == (rows, lanes), (w_slab.shape, (rows, lanes))
    TB = _pick_chunk(T)

    kernel = _make_decoder_kernel(layout, H, S, O, TB)

    packed, h_final = pl.pallas_call(
        kernel,
        out_shape=(
            jax.ShapeDtypeStruct((T, B, _LANES), jnp.float32),  # [out | attn | 0]
            jax.ShapeDtypeStruct((B, H), jnp.float32),          # final hidden
        ),
        grid=(T // TB,),
        in_specs=[
            pl.BlockSpec((TB, B, H), lambda c: (c, 0, 0)),      # chunk of step inputs
            pl.BlockSpec((B, H), lambda c: (0, 0)),             # initial hidden
            pl.BlockSpec((B, S, H), lambda c: (0, 0, 0)),       # encoder outputs (resident)
            pl.BlockSpec((rows, lanes), lambda c: (0, 0)),      # packed weights (resident)
        ],
        out_specs=(
            pl.BlockSpec((TB, B, _LANES), lambda c: (c, 0, 0)),  # per-chunk packed outputs
            pl.BlockSpec((B, H), lambda c: (0, 0)),              # carried / final hidden
        ),
        # Alias is safe only because h0 is read once (chunk 0) and the carried
        # hidden output has a constant index map (written back once at the end).
        input_output_aliases={1: 1},
        compiler_params=pltpu.CompilerParams(
            dimension_semantics=("arbitrary",)),                 # steps carry hidden
    )(inputs, h0, enc_bsh, w_slab)

    out_all = packed[:, :, 0:O]
    attn_all = packed[:, :, O:O + S]
    return out_all, h_final, attn_all


@functools.partial(jax.jit, static_argnames=("output_size",))
def decoder_forward(w_slab, inp, hidden, encoder_outputs, *, output_size):
    """Single decoder step == DecoderRNN.forward.

    inp: (B, H), hidden: (1, B, H), encoder_outputs: (S, B, H).
    Returns (output (B, O), hidden (1, B, H), attn_weights (B, 1, S))."""
    inputs = inp.astype(jnp.float32)[None]                        # (1, B, H)
    h0 = hidden[0].astype(jnp.float32)
    enc = jnp.transpose(encoder_outputs.astype(jnp.float32), (1, 0, 2))  # (B, S, H)
    out_all, h_final, attn_all = _decoder_pallas(w_slab, inputs, h0, enc, output_size)
    return out_all[0], h_final[None], attn_all[0][:, None, :]


@functools.partial(jax.jit, static_argnames=("output_size",))
def decoder_forward_fused(w_slab, inputs, hidden, encoder_outputs, *, output_size):
    """T teacher-forced decoder steps fused into ONE pallas_call (hidden carried in
    VMEM, weights/encoder outputs DMA'd once, TB steps per grid iteration).
    inputs: (T, B, H).  Returns (outputs (T,B,O), hidden (1,B,H), attn (T,B,S))."""
    enc = jnp.transpose(encoder_outputs.astype(jnp.float32), (1, 0, 2))  # (B, S, H)
    out_all, h_final, attn_all = _decoder_pallas(
        w_slab, inputs.astype(jnp.float32), hidden[0].astype(jnp.float32), enc,
        output_size)
    return out_all, h_final[None], attn_all


def init_params(key, hidden_size, output_size, seq_len):
    """PyTorch-style uniform(-1/sqrt(fan_in), 1/sqrt(fan_in)) init.
    Linear weights stored transposed as (in, out); GRU weights as (H, 3H)."""
    ks = jax.random.split(key, 12)

    def u(k, shape, fan_in):
        bound = 1.0 / jnp.sqrt(jnp.float32(fan_in))
        return jax.random.uniform(k, shape, jnp.float32, -bound, bound)

    H, O, S = hidden_size, output_size, seq_len
    return {
        # TODO(synk): self.embedding (Linear(H, H)) and dropout_p are unused in forward; not materialized.
        "attn_wT":   u(ks[0], (2 * H, S), 2 * H),
        "attn_b":    u(ks[1], (1, S), 2 * H),
        "comb_wT":   u(ks[2], (2 * H, H), 2 * H),
        "comb_b":    u(ks[3], (1, H), 2 * H),
        "gru_wih_T": u(ks[4], (H, 3 * H), H),
        "gru_whh_T": u(ks[5], (H, 3 * H), H),
        "gru_bih":   u(ks[6], (1, 3 * H), H),
        "gru_bhh":   u(ks[7], (1, 3 * H), H),
        "out_wT":    u(ks[8], (H, O), H),
        "out_b":     u(ks[9], (1, O), H),
    }


def pack_decoder_params(params):
    """Pack all weights/biases into one 128-lane f32 slab (single DMA per call).
    Matmuls sharing an LHS are lane-fused into RHS groups; GRU r/z biases are
    pre-fused (bih+bhh).  Done once, outside the hot path."""
    H = params["comb_wT"].shape[1]
    S = params["attn_wT"].shape[1]
    O = params["out_wT"].shape[1]
    layout, rows, lanes = _slab_layout(H, S, O)

    wih, whh = params["gru_wih_T"], params["gru_whh_T"]           # (H, 3H)
    bih, bhh = params["gru_bih"], params["gru_bhh"]               # (1, 3H)
    zS = jnp.zeros((1, S), jnp.float32)
    zH = jnp.zeros((1, H), jnp.float32)
    blocks = {
        "Gx":  jnp.concatenate([params["attn_wT"][:H], params["comb_wT"][:H]], 1),
        "Gh":  jnp.concatenate([params["attn_wT"][H:], whh], 1),
        "Gxt": wih,
        "Wca": params["comb_wT"][H:],
        "Wout": params["out_wT"],
        "bGx": jnp.concatenate([params["attn_b"], params["comb_b"]], 1),
        "bGh": jnp.concatenate([zS, zH, zH, bhh[:, 2 * H:]], 1),
        "bGxt": jnp.concatenate([bih[:, 0:H] + bhh[:, 0:H],
                                 bih[:, H:2 * H] + bhh[:, H:2 * H],
                                 bih[:, 2 * H:]], 1),
        "bout": params["out_b"],
    }
    slab = jnp.zeros((rows, lanes), jnp.float32)
    for name, val in blocks.items():
        r, nr, nc = layout[name]
        slab = slab.at[r:r + nr, 0:nc].set(val.astype(jnp.float32))
    return slab


def decoder_step_ref(params, x, h, encoder_outputs):
    """Pure-JAX mirror of DecoderRNN.forward for a single step (torch-layout params)."""
    H = h.shape[1]
    enc = jnp.transpose(encoder_outputs, (1, 0, 2))               # (B, S, H)
    logits = jnp.concatenate([x, h], 1) @ params["attn_wT"] + params["attn_b"]
    attn_w = jax.nn.softmax(logits, axis=1)
    attn_applied = jnp.einsum("bs,bsh->bh", attn_w, enc)
    xt = jax.nn.relu(jnp.concatenate([x, attn_applied], 1) @ params["comb_wT"]
                     + params["comb_b"])
    gi = xt @ params["gru_wih_T"] + params["gru_bih"]
    gh = h @ params["gru_whh_T"] + params["gru_bhh"]
    r = jax.nn.sigmoid(gi[:, :H] + gh[:, :H])
    z = jax.nn.sigmoid(gi[:, H:2 * H] + gh[:, H:2 * H])
    n = jnp.tanh(gi[:, 2 * H:] + r * gh[:, 2 * H:])
    h_new = (1.0 - z) * n + z * h
    out = jax.nn.relu(h_new @ params["out_wT"] + params["out_b"])
    return out, h_new, attn_w


if __name__ == "__main__":
    B, H, S, O, T = 8, 32, 8, 16, 6

    key = jax.random.PRNGKey(0)
    k_p, k_x, k_h, k_e = jax.random.split(key, 4)

    params = init_params(k_p, hidden_size=H, output_size=O, seq_len=S)
    w_slab = jax.block_until_ready(pack_decoder_params(params))

    inputs = jax.random.normal(k_x, (T, B, H), jnp.float32)       # teacher-forced step inputs
    hidden = jax.random.normal(k_h, (1, B, H), jnp.float32)
    encoder_outputs = jax.random.normal(k_e, (S, B, H), jnp.float32)

    # --- single decoder step (== DecoderRNN.forward) -------------------------
    out, h_new, attn_w = decoder_forward(w_slab, inputs[0], hidden, encoder_outputs,
                                         output_size=O)
    jax.block_until_ready((out, h_new, attn_w))

    out_r, h_r, aw_r = decoder_step_ref(params, inputs[0], hidden[0], encoder_outputs)
    assert out.shape == (B, O) and h_new.shape == (1, B, H) and attn_w.shape == (B, 1, S)
    assert jnp.allclose(out, out_r, atol=1e-5, rtol=1e-4)
    assert jnp.allclose(h_new[0], h_r, atol=1e-5, rtol=1e-4)
    assert jnp.allclose(attn_w[:, 0, :], aw_r, atol=1e-5, rtol=1e-4)

    # --- T fused decoder steps in one pallas_call -----------------------------
    outs, h_fin, attns = decoder_forward_fused(w_slab, inputs, hidden, encoder_outputs,
                                               output_size=O)
    jax.block_until_ready((outs, h_fin, attns))

    h_ref = hidden[0]
    for t in range(T):
        o_r, h_ref, a_r = decoder_step_ref(params, inputs[t], h_ref, encoder_outputs)
        assert jnp.allclose(outs[t], o_r, atol=1e-4, rtol=1e-4)
        assert jnp.allclose(attns[t], a_r, atol=1e-4, rtol=1e-4)
    assert jnp.allclose(h_fin[0], h_ref, atol=1e-4, rtol=1e-4)

    print("KERNEL_OK")
</pallas_src>

<mosaic_0001>
module attributes {stable_mosaic.version = 11 : i64} {
  func.func @kernel(%arg0: i32, %arg1: memref<1x8x32xf32, #tpu.memory_space<vmem>>, %arg2: memref<8x32xf32, #tpu.memory_space<vmem>>, %arg3: memref<8x8x32xf32, #tpu.memory_space<vmem>>, %arg4: memref<168x128xf32, #tpu.memory_space<vmem>>, %arg5: memref<1x8x128xf32, #tpu.memory_space<vmem>>, %arg6: memref<8x32xf32, #tpu.memory_space<vmem>>) attributes {dimension_semantics = [#tpu.dimension_semantics<arbitrary>], iteration_bounds = array<i64: 1>, scalar_prefetch = 0 : i64, scratch_operands = 0 : i64, tpu.core_type = #tpu.core_type<tc>, window_params = [{transform_indices = @transform_0, window_bounds = array<i64: 1, 8, 32>}, {pipeline_mode = #tpu.pipeline_mode<synchronous>, transform_indices = @transform_1, window_bounds = array<i64: 8, 32>}, {pipeline_mode = #tpu.pipeline_mode<synchronous>, transform_indices = @transform_2, window_bounds = array<i64: 8, 8, 32>}, {pipeline_mode = #tpu.pipeline_mode<synchronous>, transform_indices = @transform_3, window_bounds = array<i64: 168, 128>}, {transform_indices = @transform_4, window_bounds = array<i64: 1, 8, 128>}, {pipeline_mode = #tpu.pipeline_mode<synchronous>, transform_indices = @transform_5, window_bounds = array<i64: 8, 32>}]} {
    %c0_i32 = arith.constant 0 : i32
    %0 = arith.cmpi eq, %arg0, %c0_i32 : i32
    %1 = arith.extui %0 : i1 to i32
    %c0_i32_0 = arith.constant 0 : i32
    %2 = arith.cmpi ne, %1, %c0_i32_0 : i32
    scf.if %2 {
      %c0_36 = arith.constant 0 : index
      %c0_37 = arith.constant 0 : index
      %84 = vector.load %arg2[%c0_36, %c0_37] : memref<8x32xf32, #tpu.memory_space<vmem>>, vector<8x32xf32>
      %c0_38 = arith.constant 0 : index
      %c0_39 = arith.constant 0 : index
      %85 = vector.load %arg6[%c0_38, %c0_39] : memref<8x32xf32, #tpu.memory_space<vmem>>, vector<8x32xf32>
      tpu.vector_store %arg6[%c0_38, %c0_39], %84 {strides = array<i32>} : memref<8x32xf32, #tpu.memory_space<vmem>>, vector<8x32xf32>,
    } else {
    }
    %c0 = arith.constant 0 : index
    %c0_1 = arith.constant 0 : index
    %c0_2 = arith.constant 0 : index
    %3 = vector.load %arg3[%c0, %c0_1, %c0_2] : memref<8x8x32xf32, #tpu.memory_space<vmem>>, vector<8x8x32xf32>
    %cst = arith.constant 0.000000e+00 : f32
    %4 = vector.broadcast %cst : f32 to vector<8x104xf32>
    %c0_3 = arith.constant 0 : index
    %c0_4 = arith.constant 0 : index
    %5 = vector.load %arg6[%c0_3, %c0_4] : memref<8x32xf32, #tpu.memory_space<vmem>>, vector<8x32xf32>
    %c0_5 = arith.constant 0 : index
    %c0_6 = arith.constant 0 : index
    %c0_7 = arith.constant 0 : index
    %6 = vector.load %arg1[%c0_5, %c0_6, %c0_7] : memref<1x8x32xf32, #tpu.memory_space<vmem>>, vector<1x8x32xf32>
    %7 = vector.shape_cast %6 : vector<1x8x32xf32> to vector<8x32xf32>
    %c0_8 = arith.constant 0 : index
    %c0_9 = arith.constant 0 : index
    %8 = vector.load %arg4[%c0_8, %c0_9] : memref<168x128xf32, #tpu.memory_space<vmem>>, vector<32x128xf32>
    %cst_10 = arith.constant dense<0.000000e+00> : vector<8x128xf32>
    %9 = tpu.matmul %7, %8, %cst_10 {dimension_numbers = #tpu.dot_dimension_numbers<[1], [0], [0], [1], [0, 0, 1, 1], [], []>} : vector<8x32xf32>, vector<32x128xf32>, vector<8x128xf32> -> vector<8x128xf32>
    %c160 = arith.constant 160 : index
    %c0_11 = arith.constant 0 : index
    %10 = vector.load %arg4[%c160, %c0_11] : memref<168x128xf32, #tpu.memory_space<vmem>>, vector<1x128xf32>
    %11 = vector.broadcast %10 : vector<1x128xf32> to vector<8x128xf32>
    %12 = arith.addf %9, %11 : vector<8x128xf32>
    %c32 = arith.constant 32 : index
    %c0_12 = arith.constant 0 : index
    %13 = vector.load %arg4[%c32, %c0_12] : memref<168x128xf32, #tpu.memory_space<vmem>>, vector<32x128xf32>
    %cst_13 = arith.constant dense<0.000000e+00> : vector<8x128xf32>
    %14 = tpu.matmul %5, %13, %cst_13 {dimension_numbers = #tpu.dot_dimension_numbers<[1], [0], [0], [1], [0, 0, 1, 1], [], []>} : vector<8x32xf32>, vector<32x128xf32>, vector<8x128xf32> -> vector<8x128xf32>
    %c161 = arith.constant 161 : index
    %c0_14 = arith.constant 0 : index
    %15 = vector.load %arg4[%c161, %c0_14] : memref<168x128xf32, #tpu.memory_space<vmem>>, vector<1x128xf32>
    %16 = vector.broadcast %15 : vector<1x128xf32> to vector<8x128xf32>
    %17 = arith.addf %14, %16 : vector<8x128xf32>
    %18 = vector.extract_strided_slice %12 {offsets = [0, 0], sizes = [8, 8], strides = [1, 1]} : vector<8x128xf32> to vector<8x8xf32>
    %19 = vector.extract_strided_slice %17 {offsets = [0, 0], sizes = [8, 8], strides = [1, 1]} : vector<8x128xf32> to vector<8x8xf32>
    %20 = arith.addf %18, %19 : vector<8x8xf32>
    %cst_15 = arith.constant dense<0xFF800000> : vector<8xf32>
    %21 = vector.multi_reduction <maximumf>, %20, %cst_15 [1] : vector<8x8xf32> to vector<8xf32>
    %22 = vector.shape_cast %21 : vector<8xf32> to vector<8x1xf32>
    %23 = vector.broadcast %22 : vector<8x1xf32> to vector<8x8xf32>
    %24 = arith.subf %20, %23 : vector<8x8xf32>
    %25 = math.exp %24 : vector<8x8xf32>
    %cst_16 = arith.constant dense<0.000000e+00> : vector<8xf32>
    %26 = vector.multi_reduction <add>, %25, %cst_16 [1] : vector<8x8xf32> to vector<8xf32>
    %27 = vector.shape_cast %26 : vector<8xf32> to vector<8x1xf32>
    %28 = vector.broadcast %27 : vector<8x1xf32> to vector<8x8xf32>
    %29 = arith.divf %25, %28 : vector<8x8xf32>
    %30 = vector.shape_cast %29 : vector<8x8xf32> to vector<8x1x8xf32>
    "tpu.trace_start"() <{level = 10 : i32, message = "bqs,bsh->bqh"}> : () -> ()
    %cst_17 = arith.constant dense<0.000000e+00> : vector<8x1x32xf32>
    %31 = tpu.matmul %30, %3, %cst_17 {dimension_numbers = #tpu.dot_dimension_numbers<[2], [1], [1], [2], [0, 0, 0, 1, 1, 2], [0], [0]>} : vector<8x1x8xf32>, vector<8x8x32xf32>, vector<8x1x32xf32> -> vector<8x1x32xf32>
    "tpu.trace_stop"() : () -> ()
    %32 = vector.shape_cast %31 : vector<8x1x32xf32> to vector<8x32xf32>
    %33 = vector.extract_strided_slice %12 {offsets = [0, 8], sizes = [8, 32], strides = [1, 1]} : vector<8x128xf32> to vector<8x32xf32>
    %c96 = arith.constant 96 : index
    %c0_18 = arith.constant 0 : index
    %34 = vector.load %arg4[%c96, %c0_18] : memref<168x128xf32, #tpu.memory_space<vmem>>, vector<32x128xf32>
    %cst_19 = arith.constant dense<0.000000e+00> : vector<8x128xf32>
    %35 = tpu.matmul %32, %34, %cst_19 {dimension_numbers = #tpu.dot_dimension_numbers<[1], [0], [0], [1], [0, 0, 1, 1], [], []>} : vector<8x32xf32>, vector<32x128xf32>, vector<8x128xf32> -> vector<8x128xf32>
    %36 = vector.extract_strided_slice %35 {offsets = [0, 0], sizes = [8, 32], strides = [1, 1]} : vector<8x128xf32> to vector<8x32xf32>
    %37 = arith.addf %33, %36 : vector<8x32xf32>
    %cst_20 = arith.constant 0.000000e+00 : f32
    %38 = vector.broadcast %cst_20 : f32 to vector<8x32xf32>
    %39 = arith.maximumf %37, %38 : vector<8x32xf32>
    %c64 = arith.constant 64 : index
    %c0_21 = arith.constant 0 : index
    %40 = vector.load %arg4[%c64, %c0_21] : memref<168x128xf32, #tpu.memory_space<vmem>>, vector<32x128xf32>
    %cst_22 = arith.constant dense<0.000000e+00> : vector<8x128xf32>
    %41 = tpu.matmul %39, %40, %cst_22 {dimension_numbers = #tpu.dot_dimension_numbers<[1], [0], [0], [1], [0, 0, 1, 1], [], []>} : vector<8x32xf32>, vector<32x128xf32>, vector<8x128xf32> -> vector<8x128xf32>
    %c162 = arith.constant 162 : index
    %c0_23 = arith.constant 0 : index
    %42 = vector.load %arg4[%c162, %c0_23] : memref<168x128xf32, #tpu.memory_space<vmem>>, vector<1x128xf32>
    %43 = vector.broadcast %42 : vector<1x128xf32> to vector<8x128xf32>
    %44 = arith.addf %41, %43 : vector<8x128xf32>
    %45 = vector.extract_strided_slice %44 {offsets = [0, 0], sizes = [8, 32], strides = [1, 1]} : vector<8x128xf32> to vector<8x32xf32>
    %46 = vector.extract_strided_slice %17 {offsets = [0, 8], sizes = [8, 32], strides = [1, 1]} : vector<8x128xf32> to vector<8x32xf32>
    %47 = arith.addf %45, %46 : vector<8x32xf32>
    %48 = arith.negf %47 : vector<8x32xf32>
    %49 = math.exp %48 : vector<8x32xf32>
    %cst_24 = arith.constant 1.000000e+00 : f32
    %50 = vector.broadcast %cst_24 : f32 to vector<8x32xf32>
    %51 = arith.addf %50, %49 : vector<8x32xf32>
    %52 = arith.divf %50, %51 : vector<8x32xf32>
    %53 = vector.extract_strided_slice %44 {offsets = [0, 32], sizes = [8, 32], strides = [1, 1]} : vector<8x128xf32> to vector<8x32xf32>
    %54 = vector.extract_strided_slice %17 {offsets = [0, 40], sizes = [8, 32], strides = [1, 1]} : vector<8x128xf32> to vector<8x32xf32>
    %55 = arith.addf %53, %54 : vector<8x32xf32>
    %56 = arith.negf %55 : vector<8x32xf32>
    %57 = math.exp %56 : vector<8x32xf32>
    %cst_25 = arith.constant 1.000000e+00 : f32
    %58 = vector.broadcast %cst_25 : f32 to vector<8x32xf32>
    %59 = arith.addf %58, %57 : vector<8x32xf32>
    %60 = arith.divf %58, %59 : vector<8x32xf32>
    %61 = vector.extract_strided_slice %44 {offsets = [0, 64], sizes = [8, 32], strides = [1, 1]} : vector<8x128xf32> to vector<8x32xf32>
    %62 = vector.extract_strided_slice %17 {offsets = [0, 72], sizes = [8, 32], strides = [1, 1]} : vector<8x128xf32> to vector<8x32xf32>
    %63 = arith.mulf %52, %62 : vector<8x32xf32>
    %64 = arith.addf %61, %63 : vector<8x32xf32>
    %65 = math.tanh %64 : vector<8x32xf32>
    %cst_26 = arith.constant 1.000000e+00 : f32
    %66 = vector.broadcast %cst_26 : f32 to vector<8x32xf32>
    %67 = arith.subf %66, %60 : vector<8x32xf32>
    %68 = arith.mulf %67, %65 : vector<8x32xf32>
    %69 = arith.mulf %60, %5 : vector<8x32xf32>
    %70 = arith.addf %68, %69 : vector<8x32xf32>
    %c128 = arith.constant 128 : index
    %c0_27 = arith.constant 0 : index
    %71 = vector.load %arg4[%c128, %c0_27] : memref<168x128xf32, #tpu.memory_space<vmem>>, vector<32x128xf32>
    %cst_28 = arith.constant dense<0.000000e+00> : vector<8x128xf32>
    %72 = tpu.matmul %70, %71, %cst_28 {dimension_numbers = #tpu.dot_dimension_numbers<[1], [0], [0], [1], [0, 0, 1, 1], [], []>} : vector<8x32xf32>, vector<32x128xf32>, vector<8x128xf32> -> vector<8x128xf32>
    %c163 = arith.constant 163 : index
    %c0_29 = arith.constant 0 : index
    %73 = vector.load %arg4[%c163, %c0_29] : memref<168x128xf32, #tpu.memory_space<vmem>>, vector<1x128xf32>
    %74 = vector.broadcast %73 : vector<1x128xf32> to vector<8x128xf32>
    %75 = arith.addf %72, %74 : vector<8x128xf32>
    %cst_30 = arith.constant 0.000000e+00 : f32
    %76 = vector.broadcast %cst_30 : f32 to vector<8x128xf32>
    %77 = arith.maximumf %75, %76 : vector<8x128xf32>
    %78 = vector.extract_strided_slice %77 {offsets = [0, 0], sizes = [8, 16], strides = [1, 1]} : vector<8x128xf32> to vector<8x16xf32>
    %79 = tpu.concatenate %78, %29, %4 in 1 : vector<8x16xf32>, vector<8x8xf32>, vector<8x104xf32> -> vector<8x128xf32>
    %c0_31 = arith.constant 0 : index
    %c0_32 = arith.constant 0 : index
    %c0_33 = arith.constant 0 : index
    %80 = vector.load %arg5[%c0_31, %c0_32, %c0_33] : memref<1x8x128xf32, #tpu.memory_space<vmem>>, vector<1x8x128xf32>
    %81 = vector.shape_cast %80 : vector<1x8x128xf32> to vector<8x128xf32>
    %82 = vector.shape_cast %79 : vector<8x128xf32> to vector<1x8x128xf32>
    tpu.vector_store %arg5[%c0_31, %c0_32, %c0_33], %82 {strides = array<i32>} : memref<1x8x128xf32, #tpu.memory_space<vmem>>, vector<1x8x128xf32>,
    %c0_34 = arith.constant 0 : index
    %c0_35 = arith.constant 0 : index
    %83 = vector.load %arg6[%c0_34, %c0_35] : memref<8x32xf32, #tpu.memory_space<vmem>>, vector<8x32xf32>
    tpu.vector_store %arg6[%c0_34, %c0_35], %70 {strides = array<i32>} : memref<8x32xf32, #tpu.memory_space<vmem>>, vector<8x32xf32>,
    return
  }
  func.func @transform_0(%arg0: i32) -> (i32, i32, i32) {
    %c0_i32 = arith.constant 0 : i32
    %c0_i32_0 = arith.constant 0 : i32
    %c0_i32_1 = arith.constant 0 : i32
    return %arg0, %c0_i32, %c0_i32_0 : i32, i32, i32
  }
  func.func @transform_1(%arg0: i32) -> (i32, i32) {
    %c0_i32 = arith.constant 0 : i32
    %c0_i32_0 = arith.constant 0 : i32
    %c0_i32_1 = arith.constant 0 : i32
    return %c0_i32, %c0_i32_0 : i32, i32
  }
  func.func @transform_2(%arg0: i32) -> (i32, i32, i32) {
    %c0_i32 = arith.constant 0 : i32
    %c0_i32_0 = arith.constant 0 : i32
    %c0_i32_1 = arith.constant 0 : i32
    %c0_i32_2 = arith.constant 0 : i32
    return %c0_i32, %c0_i32_0, %c0_i32_1 : i32, i32, i32
  }
  func.func @transform_3(%arg0: i32) -> (i32, i32) {
    %c0_i32 = arith.constant 0 : i32
    %c0_i32_0 = arith.constant 0 : i32
    %c0_i32_1 = arith.constant 0 : i32
    return %c0_i32, %c0_i32_0 : i32, i32
  }
  func.func @transform_4(%arg0: i32) -> (i32, i32, i32) {
    %c0_i32 = arith.constant 0 : i32
    %c0_i32_0 = arith.constant 0 : i32
    %c0_i32_1 = arith.constant 0 : i32
    return %arg0, %c0_i32, %c0_i32_0 : i32, i32, i32
  }
  func.func @transform_5(%arg0: i32) -> (i32, i32) {
    %c0_i32 = arith.constant 0 : i32
    %c0_i32_0 = arith.constant 0 : i32
    %c0_i32_1 = arith.constant 0 : i32
    return %c0_i32, %c0_i32_0 : i32, i32
  }
}

</mosaic_0001>

<llo_original>
// kernel: decoder_forward.1
$region0: #{decoder_forward.1}
  #allocation0 [shape = 'u32[]', space=smem, size = 0x4, offset = 0x4, fixed_abs, tag = 'smem constant byte address 0x4 - core index']
  #allocation1 [shape = 'u32[144,128]{1,0:T(1,128)}', space=vmem, size = 0x12000, scoped, tag = 'internal scratch']
  %s0 = inlined_call_operand.vmem [shape: f32[1,8,32], index: 0, kind: input, shape index: {}]
  %s1 = inlined_call_operand.vmem [shape: f32[8,32], index: 1, kind: input, shape index: {}, may-alias: {1,5}]
  %s2 = inlined_call_operand.vmem [shape: f32[8,8,32], index: 2, kind: input, shape index: {}]
  %s3 = inlined_call_operand.hbm [shape: f32[168,128], index: 3, kind: input, shape index: {}]
  %s4 = inlined_call_operand.vmem [shape: f32[1,8,128], index: 4, kind: output, shape index: {0}]
  %s5 = inlined_call_operand.vmem [shape: f32[8,32], index: 5, kind: output, shape index: {1}, may-alias: {1,5}]
  %6 = xla_tuple %s4, %s5
  %s7 = sld [smem:[#allocation0]]
  $region42: #{decoder_forward.1} parent=0
    _
  %s9 = ssub.s32 1, %s7
  %s10 = scalar_select 0, %s9, %s7
  $region1: #{decoder_forward.1} parent=0
    #allocation2 [shape = 'u8[86016]{0}', space=vmem, size = 0x15000, scoped, tag = 'input window, operand 3, single buffered']
    #allocation3 [shape = 's32[1]{0}', space=sflag, size = 0x4, scoped, tag = 'scoped memory for decoder_forward.1']
    %11 = vsyncpa [#allocation3], 0
    // Predicated region
    $region2: #{decoder_forward.1} parent=1 // pred_check
      _
    $region3: #{decoder_forward.1} parent=1 // pred_check_branch
      %13 = sbr.rel (0) target = $region5
    $region4: #{decoder_forward.1} parent=1 // pred_region
      _
    $region5: #{decoder_forward.1} parent=1 // pred_fallthru
      _
    // Predicated region
    $region6: #{decoder_forward.1} parent=1 // pred_check
      _
    $region7: #{decoder_forward.1} parent=1 // pred_check_branch
      %15 = sbr.rel (0) target = $region9
    $region8: #{decoder_forward.1} parent=1 // pred_region
      _
    $region9: #{decoder_forward.1} parent=1 // pred_fallthru
      _
    // Predicated region
    $region10: #{decoder_forward.1} parent=1 // pred_check
      _
    $region11: #{decoder_forward.1} parent=1 // pred_check_branch
      %17 = sbr.rel (0) target = $region13
    $region12: #{decoder_forward.1} parent=1 // pred_region
      _
    $region13: #{decoder_forward.1} parent=1 // pred_fallthru
      _
    // Predicated region
    $region14: #{decoder_forward.1} parent=1 // pred_check
      _
    $region15: #{decoder_forward.1} parent=1 // pred_check_branch
      %19 = sbr.rel (0) target = $region17
    $region16: #{decoder_forward.1} parent=1 // pred_region
      %s21 = ssub.s32 2688, 2688
      %22 = vsyncadd [#allocation3], %s21
      %s23 = sshll.u32 [#allocation2], 4
      %s24 = int_to_ptr.vmem [resolvable:$true] %s23
      %29 = dma.hbm_to_vmem [thread:$0]  %s3, 2688, %s24, [#allocation3], 128, 128, 8
    $region17: #{decoder_forward.1} parent=1 // pred_fallthru
      _
    // Predicated region
    $region18: #{decoder_forward.1} parent=1 // pred_check
      _
    $region19: #{decoder_forward.1} parent=1 // pred_check_branch
      %31 = sbr.rel (0) target = $region21
    $region20: #{decoder_forward.1} parent=1 // pred_region
      %32 = dma.done [#allocation3], 2688
    $region21: #{decoder_forward.1} parent=1 // pred_fallthru
      _
    %p33 = scmp.eq.s32.totalorder 0, 0
    // Predicated region
    $region22: #{decoder_forward.1} parent=1 // pred_check
      %p34 = pneg %p33
    $region23: #{decoder_forward.1} parent=1 // pred_check_branch
      %36 = sbr.rel (%p34) target = $region25
    $region24: #{decoder_forward.1} parent=1 // pred_region
      %v37 = vld [vmem:[%s1] sm:$0xff]
      %vm38 = vcmask 261120
      %39 = vst.msk [vmem:[%s5] sm:$0xff] %vm38, %v37
    $region25: #{decoder_forward.1} parent=1 // pred_fallthru
      _
    %v40 = vld [vmem:[%s2] sm:$0xff]
    %v41 = vld [vmem:[%s2 + $0x8] sm:$0xff]
    %v42 = vld [vmem:[%s2 + $0x10] sm:$0xff]
    %v43 = vld [vmem:[%s2 + $0x18] sm:$0xff]
    %v44 = vld [vmem:[%s2 + $0x20] sm:$0xff]
    %v45 = vld [vmem:[%s2 + $0x28] sm:$0xff]
    %v46 = vld [vmem:[%s2 + $0x30] sm:$0xff]
    %v47 = vld [vmem:[%s2 + $0x38] sm:$0xff]
    %v48 = vld [vmem:[%s5] sm:$0xff]
    %v49 = vld [vmem:[%s0] sm:$0xff]
    %v50 = vld [vmem:[#allocation2] sm:$0xff]
    %v51 = vld [vmem:[#allocation2 + $0x8] sm:$0xff]
    %v52 = vld [vmem:[#allocation2 + $0x10] sm:$0xff]
    %v53 = vld [vmem:[#allocation2 + $0x18] sm:$0xff]
    %v54 = vld [vmem:[#allocation2 + $0xa0] sm:$0x1]
    %v55 = vlaneseq
    %v56 = vshrl.u32 %v55, 7
    %v57 = vsub.s32 0, %v56
    %v58 = vrot.slane %v54, %v57
    %vm59 = vcmask 261120
    %v61 = vsel %vm59, %v49, 0
    %63 = vmatprep.subr.mxu0 0.0
    %64 = vmatpush1.msra.mxu0 %v50
    %65 = vmatprep.subr.mxu0 0.0
    %66 = vmatpush1.msra.mxu0 %v51
    %67 = vmatprep.subr.mxu0 0.0
    %68 = vmatpush1.msra.mxu0 %v52
    %69 = vmatprep.subr.mxu0 0.0
    %70 = vmatpush1.msra.mxu0 %v53
    %71 = vmatprep.subr.mxu0 0.0
    %72 = vmatpush1.msra.mxu0 0.0
    %73 = vmatprep.subr.mxu0 0.0
    %74 = vmatpush1.msra.mxu0 0.0
    %75 = vmatprep.subr.mxu0 0.0
    %76 = vmatpush1.msra.mxu0 0.0
    %77 = vmatprep.subr.mxu0 0.0
    %78 = vmatpush1.msra.mxu0 0.0
    %79 = vmatprep.subr.mxu0 0.0
    %80 = vmatpush1.msra.mxu0 0.0
    %81 = vmatprep.subr.mxu0 0.0
    %82 = vmatpush1.msra.mxu0 0.0
    %83 = vmatprep.subr.mxu0 0.0
    %84 = vmatpush1.msra.mxu0 0.0
    %85 = vmatprep.subr.mxu0 0.0
    %86 = vmatpush1.msra.mxu0 0.0
    %87 = vmatprep.subr.mxu0 0.0
    %88 = vmatpush1.msra.mxu0 0.0
    %89 = vmatprep.subr.mxu0 0.0
    %90 = vmatpush1.msra.mxu0 0.0
    %91 = vmatprep.subr.mxu0 0.0
    %92 = vmatpush1.msra.mxu0 0.0
    %93 = vmatprep.subr.mxu0 0.0
    %94 = vmatpush1.msra.mxu0 0.0
    %95 = vmatprep.subr.mxu0 0.0
    %96 = vmatpush1.msra.mxu0 0.0
    %97 = vmatprep.subr.mxu0 0.0
    %98 = vmatpush1.msra.mxu0 0.0
    %99 = vmatprep.subr.mxu0 0.0
    %100 = vmatpush1.msra.mxu0 0.0
    %101 = vmatprep.subr.mxu0 0.0
    %102 = vmatpush1.msra.mxu0 0.0
    %103 = vmatprep.subr.mxu0 0.0
    %104 = vmatpush1.msra.mxu0 0.0
    %105 = vmatprep.subr.mxu0 0.0
    %106 = vmatpush1.msra.mxu0 0.0
    %107 = vmatprep.subr.mxu0 0.0
    %108 = vmatpush1.msra.mxu0 0.0
    %109 = vmatprep.subr.mxu0 0.0
    %110 = vmatpush1.msra.mxu0 0.0
    %111 = vmatprep.subr.mxu0 0.0
    %112 = vmatpush1.msra.mxu0 0.0
    %113 = vmatprep.subr.mxu0 0.0
    %114 = vmatpush1.msra.mxu0 0.0
    %115 = vmatprep.subr.mxu0 0.0
    %116 = vmatpush1.msra.mxu0 0.0
    %117 = vmatprep.subr.mxu0 0.0
    %118 = vmatpush1.msra.mxu0 0.0
    %119 = vmatprep.subr.mxu0 0.0
    %120 = vmatpush1.msra.mxu0 0.0
    %121 = vmatprep.subr.mxu0 0.0
    %122 = vmatpush1.msra.mxu0 0.0
    %123 = vmatprep.subr.mxu0 0.0
    %124 = vmatpush1.msra.mxu0 0.0
    %125 = vmatprep.subr.mxu0 0.0
    %126 = vmatpush1.msra.mxu0 0.0
    %127 = vmatprep.mubr.f32.mxu0 0.0
    %128 = vmatmul.mubr.f32.gmra.mrb[0].mxu0 %v61
    %v129 = vpop.f32.mrb[0].mxu0
    %v130 = vadd.f32 %v58, %v129
    %v131 = vpop.f32.mrb[0].mxu0
    %132 = vdwg.mxu0
    %v133 = vld [vmem:[#allocation2 + $0x20] sm:$0xff]
    %v134 = vld [vmem:[#allocation2 + $0x28] sm:$0xff]
    %v135 = vld [vmem:[#allocation2 + $0x30] sm:$0xff]
    %v136 = vld [vmem:[#allocation2 + $0x38] sm:$0xff]
    %v137 = vld [vmem:[#allocation2 + $0xa1] sm:$0x1]
    %v138 = vlaneseq
    %v139 = vshrl.u32 %v138, 7
    %v140 = vsub.s32 0, %v139
    %v141 = vrot.slane %v137, %v140
    %v143 = vsel %vm59, %v48, 0
    %145 = vmatprep.subr.mxu0 0.0
    %146 = vmatpush1.msra.mxu0 %v133
    %147 = vmatprep.subr.mxu0 0.0
    %148 = vmatpush1.msra.mxu0 %v134
    %149 = vmatprep.subr.mxu0 0.0
    %150 = vmatpush1.msra.mxu0 %v135
    %151 = vmatprep.subr.mxu0 0.0
    %152 = vmatpush1.msra.mxu0 %v136
    %153 = vmatprep.subr.mxu0 0.0
    %154 = vmatpush1.msra.mxu0 0.0
    %155 = vmatprep.subr.mxu0 0.0
    %156 = vmatpush1.msra.mxu0 0.0
    %157 = vmatprep.subr.mxu0 0.0
    %158 = vmatpush1.msra.mxu0 0.0
    %159 = vmatprep.subr.mxu0 0.0
    %160 = vmatpush1.msra.mxu0 0.0
    %161 = vmatprep.subr.mxu0 0.0
    %162 = vmatpush1.msra.mxu0 0.0
    %163 = vmatprep.subr.mxu0 0.0
    %164 = vmatpush1.msra.mxu0 0.0
    %165 = vmatprep.subr.mxu0 0.0
    %166 = vmatpush1.msra.mxu0 0.0
    %167 = vmatprep.subr.mxu0 0.0
    %168 = vmatpush1.msra.mxu0 0.0
    %169 = vmatprep.subr.mxu0 0.0
    %170 = vmatpush1.msra.mxu0 0.0
    %171 = vmatprep.subr.mxu0 0.0
    %172 = vmatpush1.msra.mxu0 0.0
    %173 = vmatprep.subr.mxu0 0.0
    %174 = vmatpush1.msra.mxu0 0.0
    %175 = vmatprep.subr.mxu0 0.0
    %176 = vmatpush1.msra.mxu0 0.0
    %177 = vmatprep.subr.mxu0 0.0
    %178 = vmatpush1.msra.mxu0 0.0
    %179 = vmatprep.subr.mxu0 0.0
    %180 = vmatpush1.msra.mxu0 0.0
    %181 = vmatprep.subr.mxu0 0.0
    %182 = vmatpush1.msra.mxu0 0.0
    %183 = vmatprep.subr.mxu0 0.0
    %184 = vmatpush1.msra.mxu0 0.0
    %185 = vmatprep.subr.mxu0 0.0
    %186 = vmatpush1.msra.mxu0 0.0
    %187 = vmatprep.subr.mxu0 0.0
    %188 = vmatpush1.msra.mxu0 0.0
    %189 = vmatprep.subr.mxu0 0.0
    %190 = vmatpush1.msra.mxu0 0.0
    %191 = vmatprep.subr.mxu0 0.0
    %192 = vmatpush1.msra.mxu0 0.0
    %193 = vmatprep.subr.mxu0 0.0
    %194 = vmatpush1.msra.mxu0 0.0
    %195 = vmatprep.subr.mxu0 0.0
    %196 = vmatpush1.msra.mxu0 0.0
    %197 = vmatprep.subr.mxu0 0.0
    %198 = vmatpush1.msra.mxu0 0.0
    %199 = vmatprep.subr.mxu0 0.0
    %200 = vmatpush1.msra.mxu0 0.0
    %201 = vmatprep.subr.mxu0 0.0
    %202 = vmatpush1.msra.mxu0 0.0
    %203 = vmatprep.subr.mxu0 0.0
    %204 = vmatpush1.msra.mxu0 0.0
    %205 = vmatprep.subr.mxu0 0.0
    %206 = vmatpush1.msra.mxu0 0.0
    %207 = vmatprep.subr.mxu0 0.0
    %208 = vmatpush1.msra.mxu0 0.0
    %209 = vmatprep.mubr.f32.mxu0 0.0
    %210 = vmatmul.mubr.f32.gmra.mrb[0].mxu0 %v143
    %v211 = vpop.f32.mrb[0].mxu0
    %v212 = vadd.f32 %v141, %v211
    %v213 = vpop.f32.mrb[0].mxu0
    %214 = vdwg.mxu0
    %v215 = vadd.f32 %v130, %v212
    %vm216 = vcmask 64512
    %v217 = vsel %vm216, %v215, -inf
    %218 = vmax.xlane.f32.xlu0 %v217
    %v219 = vpop.xlane.xlu0 %218
    %v220 = vsub.f32 %v215, %v219
    %v221 = vmul.f32 %v220, 1.442695
    %v222 = vpow.pop %v221
    %v223 = vsel %vm216, %v222, 0.0
    %224 = vadd.xlane.f32.xlu0 %v223
    %v225 = vpop.xlane.xlu0 %224
    %v226 = vrcp.pop %v225
    %v227 = vmul.f32 %v222, %v226
    %v229 = vcombine.high %v227, %v227
    %v231 = vunpack.c.l.s4 1966171168
    %v232 = vunpack.c.0.s8 %v231
    %v233 = vlaneseq
    %v234 = vshrl.u32 %v233, 7
    %v235 = vsub.s32 %v232, %v234
    %v236 = vrot.slane %v227, %v235
    %v238 = vunpack.c.l.s4 1966171168
    %v239 = vunpack.c.0.s8 %v238
    %v240 = vlaneseq
    %v241 = vshrl.u32 %v240, 7
    %v242 = vsub.s32 %v239, %v241
    %v243 = vrot.slane %v229, %v242
    %v244 = vcombine.high %v236, %v236
    %v245 = vcombine.high %v243, %v243
    %v247 = vunpack.c.l.s4 1966171168
    %v248 = vunpack.c.0.s8 %v247
    %v249 = vlaneseq
    %v250 = vshrl.u32 %v249, 7
    %v251 = vsub.s32 %v248, %v250
    %v252 = vrot.slane %v236, %v251
    %v254 = vunpack.c.l.s4 1966171168
    %v255 = vunpack.c.0.s8 %v254
    %v256 = vlaneseq
    %v257 = vshrl.u32 %v256, 7
    %v258 = vsub.s32 %v255, %v257
    %v259 = vrot.slane %v243, %v258
    %v261 = vunpack.c.l.s4 1966171168
    %v262 = vunpack.c.0.s8 %v261
    %v263 = vlaneseq
    %v264 = vshrl.u32 %v263, 7
    %v265 = vsub.s32 %v262, %v264
    %v266 = vrot.slane %v244, %v265
    %v268 = vunpack.c.l.s4 1966171168
    %v269 = vunpack.c.0.s8 %v268
    %v270 = vlaneseq
    %v271 = vshrl.u32 %v270, 7
    %v272 = vsub.s32 %v269, %v271
    %v273 = vrot.slane %v245, %v272
    %v274 = vcombine.high %v252, %v252
    %v275 = vcombine.high %v259, %v259
    %v276 = vcombine.high %v266, %v266
    %v277 = vcombine.high %v273, %v273
    %v278 = vsel %vm216, %v252, 0
    %280 = vmatprep.subr.mxu0 0.0
    %281 = vmatpush1.msra.mxu0 %v40
    %282 = vmatprep.subr.mxu0 0.0
    %283 = vmatpush1.msra.mxu0 0.0
    %284 = vmatprep.subr.mxu0 0.0
    %285 = vmatpush1.msra.mxu0 0.0
    %286 = vmatprep.subr.mxu0 0.0
    %287 = vmatpush1.msra.mxu0 0.0
    %288 = vmatprep.subr.mxu0 0.0
    %289 = vmatpush1.msra.mxu0 0.0
    %290 = vmatprep.subr.mxu0 0.0
    %291 = vmatpush1.msra.mxu0 0.0
    %292 = vmatprep.subr.mxu0 0.0
    %293 = vmatpush1.msra.mxu0 0.0
    %294 = vmatprep.subr.mxu0 0.0
    %295 = vmatpush1.msra.mxu0 0.0
    %296 = vmatprep.subr.mxu0 0.0
    %297 = vmatpush1.msra.mxu0 0.0
    %298 = vmatprep.subr.mxu0 0.0
    %299 = vmatpush1.msra.mxu0 0.0
    %300 = vmatprep.subr.mxu0 0.0
    %301 = vmatpush1.msra.mxu0 0.0
    %302 = vmatprep.subr.mxu0 0.0
    %303 = vmatpush1.msra.mxu0 0.0
    %304 = vmatprep.subr.mxu0 0.0
    %305 = vmatpush1.msra.mxu0 0.0
    %306 = vmatprep.subr.mxu0 0.0
    %307 = vmatpush1.msra.mxu0 0.0
    %308 = vmatprep.subr.mxu0 0.0
    %309 = vmatpush1.msra.mxu0 0.0
    %310 = vmatprep.subr.mxu0 0.0
    %311 = vmatpush1.msra.mxu0 0.0
    %312 = vmatprep.subr.mxu0 0.0
    %313 = vmatpush1.msra.mxu0 0.0
    %314 = vmatprep.subr.mxu0 0.0
    %315 = vmatpush1.msra.mxu0 0.0
    %316 = vmatprep.subr.mxu0 0.0
    %317 = vmatpush1.msra.mxu0 0.0
    %318 = vmatprep.subr.mxu0 0.0
    %319 = vmatpush1.msra.mxu0 0.0
    %320 = vmatprep.subr.mxu0 0.0
    %321 = vmatpush1.msra.mxu0 0.0
    %322 = vmatprep.subr.mxu0 0.0
    %323 = vmatpush1.msra.mxu0 0.0
    %324 = vmatprep.subr.mxu0 0.0
    %325 = vmatpush1.msra.mxu0 0.0
    %326 = vmatprep.subr.mxu0 0.0
    %327 = vmatpush1.msra.mxu0 0.0
    %328 = vmatprep.subr.mxu0 0.0
    %329 = vmatpush1.msra.mxu0 0.0
    %330 = vmatprep.subr.mxu0 0.0
    %331 = vmatpush1.msra.mxu0 0.0
    %332 = vmatprep.subr.mxu0 0.0
    %333 = vmatpush1.msra.mxu0 0.0
    %334 = vmatprep.subr.mxu0 0.0
    %335 = vmatpush1.msra.mxu0 0.0
    %336 = vmatprep.subr.mxu0 0.0
    %337 = vmatpush1.msra.mxu0 0.0
    %338 = vmatprep.subr.mxu0 0.0
    %339 = vmatpush1.msra.mxu0 0.0
    %340 = vmatprep.subr.mxu0 0.0
    %341 = vmatpush1.msra.mxu0 0.0
    %342 = vmatprep.subr.mxu0 0.0
    %343 = vmatpush1.msra.mxu0 0.0
    %344 = vmatprep.mubr.f32.mxu0 0.0
    %345 = vmatmul.mubr.f32.gmra.mrb[0].mxu0 %v278
    %v346 = vpop.f32.mrb[0].mxu0
    %v347 = vadd.f32 0.0, %v346
    %v348 = vpop.f32.mrb[0].mxu0
    %349 = vdwg.mxu0
    %v350 = vsel %vm216, %v266, 0
    %352 = vmatprep.subr.mxu0 0.0
    %353 = vmatpush1.msra.mxu0 %v41
    %354 = vmatprep.subr.mxu0 0.0
    %355 = vmatpush1.msra.mxu0 0.0
    %356 = vmatprep.subr.mxu0 0.0
    %357 = vmatpush1.msra.mxu0 0.0
    %358 = vmatprep.subr.mxu0 0.0
    %359 = vmatpush1.msra.mxu0 0.0
    %360 = vmatprep.subr.mxu0 0.0
    %361 = vmatpush1.msra.mxu0 0.0
    %362 = vmatprep.subr.mxu0 0.0
    %363 = vmatpush1.msra.mxu0 0.0
    %364 = vmatprep.subr.mxu0 0.0
    %365 = vmatpush1.msra.mxu0 0.0
    %366 = vmatprep.subr.mxu0 0.0
    %367 = vmatpush1.msra.mxu0 0.0
    %368 = vmatprep.subr.mxu0 0.0
    %369 = vmatpush1.msra.mxu0 0.0
    %370 = vmatprep.subr.mxu0 0.0
    %371 = vmatpush1.msra.mxu0 0.0
    %372 = vmatprep.subr.mxu0 0.0
    %373 = vmatpush1.msra.mxu0 0.0
    %374 = vmatprep.subr.mxu0 0.0
    %375 = vmatpush1.msra.mxu0 0.0
    %376 = vmatprep.subr.mxu0 0.0
    %377 = vmatpush1.msra.mxu0 0.0
    %378 = vmatprep.subr.mxu0 0.0
    %379 = vmatpush1.msra.mxu0 0.0
    %380 = vmatprep.subr.mxu0 0.0
    %381 = vmatpush1.msra.mxu0 0.0
    %382 = vmatprep.subr.mxu0 0.0
    %383 = vmatpush1.msra.mxu0 0.0
    %384 = vmatprep.subr.mxu0 0.0
    %385 = vmatpush1.msra.mxu0 0.0
    %386 = vmatprep.subr.mxu0 0.0
    %387 = vmatpush1.msra.mxu0 0.0
    %388 = vmatprep.subr.mxu0 0.0
    %389 = vmatpush1.msra.mxu0 0.0
    %390 = vmatprep.subr.mxu0 0.0
    %391 = vmatpush1.msra.mxu0 0.0
    %392 = vmatprep.subr.mxu0 0.0
    %393 = vmatpush1.msra.mxu0 0.0
    %394 = vmatprep.subr.mxu0 0.0
    %395 = vmatpush1.msra.mxu0 0.0
    %396 = vmatprep.subr.mxu0 0.0
    %397 = vmatpush1.msra.mxu0 0.0
    %398 = vmatprep.subr.mxu0 0.0
    %399 = vmatpush1.msra.mxu0 0.0
    %400 = vmatprep.subr.mxu0 0.0
    %401 = vmatpush1.msra.mxu0 0.0
    %402 = vmatprep.subr.mxu0 0.0
    %403 = vmatpush1.msra.mxu0 0.0
    %404 = vmatprep.subr.mxu0 0.0
    %405 = vmatpush1.msra.mxu0 0.0
    %406 = vmatprep.subr.mxu0 0.0
    %407 = vmatpush1.msra.mxu0 0.0
    %408 = vmatprep.subr.mxu0 0.0
    %409 = vmatpush1.msra.mxu0 0.0
    %410 = vmatprep.subr.mxu0 0.0
    %411 = vmatpush1.msra.mxu0 0.0
    %412 = vmatprep.subr.mxu0 0.0
    %413 = vmatpush1.msra.mxu0 0.0
    %414 = vmatprep.subr.mxu0 0.0
    %415 = vmatpush1.msra.mxu0 0.0
    %416 = vmatprep.mubr.f32.mxu0 0.0
    %417 = vmatmul.mubr.f32.gmra.mrb[0].mxu0 %v350
    %v418 = vpop.f32.mrb[0].mxu0
    %v419 = vadd.f32 0.0, %v418
    %v420 = vpop.f32.mrb[0].mxu0
    %421 = vdwg.mxu0
    %v422 = vsel %vm216, %v274, 0
    %424 = vmatprep.subr.mxu0 0.0
    %425 = vmatpush1.msra.mxu0 %v42
    %426 = vmatprep.subr.mxu0 0.0
    %427 = vmatpush1.msra.mxu0 0.0
    %428 = vmatprep.subr.mxu0 0.0
    %429 = vmatpush1.msra.mxu0 0.0
    %430 = vmatprep.subr.mxu0 0.0
    %431 = vmatpush1.msra.mxu0 0.0
    %432 = vmatprep.subr.mxu0 0.0
    %433 = vmatpush1.msra.mxu0 0.0
    %434 = vmatprep.subr.mxu0 0.0
    %435 = vmatpush1.msra.mxu0 0.0
    %436 = vmatprep.subr.mxu0 0.0
    %437 = vmatpush1.msra.mxu0 0.0
    %438 = vmatprep.subr.mxu0 0.0
    %439 = vmatpush1.msra.mxu0 0.0
    %440 = vmatprep.subr.mxu0 0.0
    %441 = vmatpush1.msra.mxu0 0.0
    %442 = vmatprep.subr.mxu0 0.0
    %443 = vmatpush1.msra.mxu0 0.0
    %444 = vmatprep.subr.mxu0 0.0
    %445 = vmatpush1.msra.mxu0 0.0
    %446 = vmatprep.subr.mxu0 0.0
    %447 = vmatpush1.msra.mxu0 0.0
    %448 = vmatprep.subr.mxu0 0.0
    %449 = vmatpush1.msra.mxu0 0.0
    %450 = vmatprep.subr.mxu0 0.0
    %451 = vmatpush1.msra.mxu0 0.0
    %452 = vmatprep.subr.mxu0 0.0
    %453 = vmatpush1.msra.mxu0 0.0
    %454 = vmatprep.subr.mxu0 0.0
    %455 = vmatpush1.msra.mxu0 0.0
    %456 = vmatprep.subr.mxu0 0.0
    %457 = vmatpush1.msra.mxu0 0.0
    %458 = vmatprep.subr.mxu0 0.0
    %459 = vmatpush1.msra.mxu0 0.0
    %460 = vmatprep.subr.mxu0 0.0
    %461 = vmatpush1.msra.mxu0 0.0
    %462 = vmatprep.subr.mxu0 0.0
    %463 = vmatpush1.msra.mxu0 0.0
    %464 = vmatprep.subr.mxu0 0.0
    %465 = vmatpush1.msra.mxu0 0.0
    %466 = vmatprep.subr.mxu0 0.0
    %467 = vmatpush1.msra.mxu0 0.0
    %468 = vmatprep.subr.mxu0 0.0
    %469 = vmatpush1.msra.mxu0 0.0
    %470 = vmatprep.subr.mxu0 0.0
    %471 = vmatpush1.msra.mxu0 0.0
    %472 = vmatprep.subr.mxu0 0.0
    %473 = vmatpush1.msra.mxu0 0.0
    %474 = vmatprep.subr.mxu0 0.0
    %475 = vmatpush1.msra.mxu0 0.0
    %476 = vmatprep.subr.mxu0 0.0
    %477 = vmatpush1.msra.mxu0 0.0
    %478 = vmatprep.subr.mxu0 0.0
    %479 = vmatpush1.msra.mxu0 0.0
    %480 = vmatprep.subr.mxu0 0.0
    %481 = vmatpush1.msra.mxu0 0.0
    %482 = vmatprep.subr.mxu0 0.0
    %483 = vmatpush1.msra.mxu0 0.0
    %484 = vmatprep.subr.mxu0 0.0
    %485 = vmatpush1.msra.mxu0 0.0
    %486 = vmatprep.subr.mxu0 0.0
    %487 = vmatpush1.msra.mxu0 0.0
    %488 = vmatprep.mubr.f32.mxu0 0.0
    %489 = vmatmul.mubr.f32.gmra.mrb[0].mxu0 %v422
    %v490 = vpop.f32.mrb[0].mxu0
    %v491 = vadd.f32 0.0, %v490
    %v492 = vpop.f32.mrb[0].mxu0
    %493 = vdwg.mxu0
    %v494 = vsel %vm216, %v276, 0
    %496 = vmatprep.subr.mxu0 0.0
    %497 = vmatpush1.msra.mxu0 %v43
    %498 = vmatprep.subr.mxu0 0.0
    %499 = vmatpush1.msra.mxu0 0.0
    %500 = vmatprep.subr.mxu0 0.0
    %501 = vmatpush1.msra.mxu0 0.0
    %502 = vmatprep.subr.mxu0 0.0
    %503 = vmatpush1.msra.mxu0 0.0
    %504 = vmatprep.subr.mxu0 0.0
    %505 = vmatpush1.msra.mxu0 0.0
    %506 = vmatprep.subr.mxu0 0.0
    %507 = vmatpush1.msra.mxu0 0.0
    %508 = vmatprep.subr.mxu0 0.0
    %509 = vmatpush1.msra.mxu0 0.0
    %510 = vmatprep.subr.mxu0 0.0
    %511 = vmatpush1.msra.mxu0 0.0
    %512 = vmatprep.subr.mxu0 0.0
    %513 = vmatpush1.msra.mxu0 0.0
    %514 = vmatprep.subr.mxu0 0.0
    %515 = vmatpush1.msra.mxu0 0.0
    %516 = vmatprep.subr.mxu0 0.0
    %517 = vmatpush1.msra.mxu0 0.0
    %518 = vmatprep.subr.mxu0 0.0
    %519 = vmatpush1.msra.mxu0 0.0
    %520 = vmatprep.subr.mxu0 0.0
    %521 = vmatpush1.msra.mxu0 0.0
    %522 = vmatprep.subr.mxu0 0.0
    %523 = vmatpush1.msra.mxu0 0.0
    %524 = vmatprep.subr.mxu0 0.0
    %525 = vmatpush1.msra.mxu0 0.0
    %526 = vmatprep.subr.mxu0 0.0
    %527 = vmatpush1.msra.mxu0 0.0
    %528 = vmatprep.subr.mxu0 0.0
    %529 = vmatpush1.msra.mxu0 0.0
    %530 = vmatprep.subr.mxu0 0.0
    %531 = vmatpush1.msra.mxu0 0.0
    %532 = vmatprep.subr.mxu0 0.0
    %533 = vmatpush1.msra.mxu0 0.0
    %534 = vmatprep.subr.mxu0 0.0
    %535 = vmatpush1.msra.mxu0 0.0
    %536 = vmatprep.subr.mxu0 0.0
    %537 = vmatpush1.msra.mxu0 0.0
    %538 = vmatprep.subr.mxu0 0.0
    %539 = vmatpush1.msra.mxu0 0.0
    %540 = vmatprep.subr.mxu0 0.0
    %541 = vmatpush1.msra.mxu0 0.0
    %542 = vmatprep.subr.mxu0 0.0
    %543 = vmatpush1.msra.mxu0 0.0
    %544 = vmatprep.subr.mxu0 0.0
    %545 = vmatpush1.msra.mxu0 0.0
    %546 = vmatprep.subr.mxu0 0.0
    %547 = vmatpush1.msra.mxu0 0.0
    %548 = vmatprep.subr.mxu0 0.0
    %549 = vmatpush1.msra.mxu0 0.0
    %550 = vmatprep.subr.mxu0 0.0
    %551 = vmatpush1.msra.mxu0 0.0
    %552 = vmatprep.subr.mxu0 0.0
    %553 = vmatpush1.msra.mxu0 0.0
    %554 = vmatprep.subr.mxu0 0.0
    %555 = vmatpush1.msra.mxu0 0.0
    %556 = vmatprep.subr.mxu0 0.0
    %557 = vmatpush1.msra.mxu0 0.0
    %558 = vmatprep.subr.mxu0 0.0
    %559 = vmatpush1.msra.mxu0 0.0
    %560 = vmatprep.mubr.f32.mxu0 0.0
    %561 = vmatmul.mubr.f32.gmra.mrb[0].mxu0 %v494
    %v562 = vpop.f32.mrb[0].mxu0
    %v563 = vadd.f32 0.0, %v562
    %v564 = vpop.f32.mrb[0].mxu0
    %565 = vdwg.mxu0
    %v566 = vsel %vm216, %v259, 0
    %568 = vmatprep.subr.mxu0 0.0
    %569 = vmatpush1.msra.mxu0 %v44
    %570 = vmatprep.subr.mxu0 0.0
    %571 = vmatpush1.msra.mxu0 0.0
    %572 = vmatprep.subr.mxu0 0.0
    %573 = vmatpush1.msra.mxu0 0.0
    %574 = vmatprep.subr.mxu0 0.0
    %575 = vmatpush1.msra.mxu0 0.0
    %576 = vmatprep.subr.mxu0 0.0
    %577 = vmatpush1.msra.mxu0 0.0
    %578 = vmatprep.subr.mxu0 0.0
    %579 = vmatpush1.msra.mxu0 0.0
    %580 = vmatprep.subr.mxu0 0.0
    %581 = vmatpush1.msra.mxu0 0.0
    %582 = vmatprep.subr.mxu0 0.0
    %583 = vmatpush1.msra.mxu0 0.0
    %584 = vmatprep.subr.mxu0 0.0
    %585 = vmatpush1.msra.mxu0 0.0
    %586 = vmatprep.subr.mxu0 0.0
    %587 = vmatpush1.msra.mxu0 0.0
    %588 = vmatprep.subr.mxu0 0.0
    %589 = vmatpush1.msra.mxu0 0.0
    %590 = vmatprep.subr.mxu0 0.0
    %591 = vmatpush1.msra.mxu0 0.0
    %592 = vmatprep.subr.mxu0 0.0
    %593 = vmatpush1.msra.mxu0 0.0
    %594 = vmatprep.subr.mxu0 0.0
    %595 = vmatpush1.msra.mxu0 0.0
    %596 = vmatprep.subr.mxu0 0.0
    %597 = vmatpush1.msra.mxu0 0.0
    %598 = vmatprep.subr.mxu0 0.0
    %599 = vmatpush1.msra.mxu0 0.0
    %600 = vmatprep.subr.mxu0 0.0
    %601 = vmatpush1.msra.mxu0 0.0
    %602 = vmatprep.subr.mxu0 0.0
    %603 = vmatpush1.msra.mxu0 0.0
    %604 = vmatprep.subr.mxu0 0.0
    %605 = vmatpush1.msra.mxu0 0.0
    %606 = vmatprep.subr.mxu0 0.0
    %607 = vmatpush1.msra.mxu0 0.0
    %608 = vmatprep.subr.mxu0 0.0
    %609 = vmatpush1.msra.mxu0 0.0
    %610 = vmatprep.subr.mxu0 0.0
    %611 = vmatpush1.msra.mxu0 0.0
    %612 = vmatprep.subr.mxu0 0.0
    %613 = vmatpush1.msra.mxu0 0.0
    %614 = vmatprep.subr.mxu0 0.0
    %615 = vmatpush1.msra.mxu0 0.0
    %616 = vmatprep.subr.mxu0 0.0
    %617 = vmatpush1.msra.mxu0 0.0
    %618 = vmatprep.subr.mxu0 0.0
    %619 = vmatpush1.msra.mxu0 0.0
    %620 = vmatprep.subr.mxu0 0.0
    %621 = vmatpush1.msra.mxu0 0.0
    %622 = vmatprep.subr.mxu0 0.0
    %623 = vmatpush1.msra.mxu0 0.0
    %624 = vmatprep.subr.mxu0 0.0
    %625 = vmatpush1.msra.mxu0 0.0
    %626 = vmatprep.subr.mxu0 0.0
    %627 = vmatpush1.msra.mxu0 0.0
    %628 = vmatprep.subr.mxu0 0.0
    %629 = vmatpush1.msra.mxu0 0.0
    %630 = vmatprep.subr.mxu0 0.0
    %631 = vmatpush1.msra.mxu0 0.0
    %632 = vmatprep.mubr.f32.mxu0 0.0
    %633 = vmatmul.mubr.f32.gmra.mrb[0].mxu0 %v566
    %v634 = vpop.f32.mrb[0].mxu0
    %v635 = vadd.f32 0.0, %v634
    %v636 = vpop.f32.mrb[0].mxu0
    %637 = vdwg.mxu0
    %v638 = vsel %vm216, %v273, 0
    %640 = vmatprep.subr.mxu0 0.0
    %641 = vmatpush1.msra.mxu0 %v45
    %642 = vmatprep.subr.mxu0 0.0
    %643 = vmatpush1.msra.mxu0 0.0
    %644 = vmatprep.subr.mxu0 0.0
    %645 = vmatpush1.msra.mxu0 0.0
    %646 = vmatprep.subr.mxu0 0.0
    %647 = vmatpush1.msra.mxu0 0.0
    %648 = vmatprep.subr.mxu0 0.0
    %649 = vmatpush1.msra.mxu0 0.0
    %650 = vmatprep.subr.mxu0 0.0
    %651 = vmatpush1.msra.mxu0 0.0
    %652 = vmatprep.subr.mxu0 0.0
    %653 = vmatpush1.msra.mxu0 0.0
    %654 = vmatprep.subr.mxu0 0.0
    %655 = vmatpush1.msra.mxu0 0.0
    %656 = vmatprep.subr.mxu0 0.0
    %657 = vmatpush1.msra.mxu0 0.0
    %658 = vmatprep.subr.mxu0 0.0
    %659 = vmatpush1.msra.mxu0 0.0
    %660 = vmatprep.subr.mxu0 0.0
    %661 = vmatpush1.msra.mxu0 0.0
    %662 = vmatprep.subr.mxu0 0.0
    %663 = vmatpush1.msra.mxu0 0.0
    %664 = vmatprep.subr.mxu0 0.0
    %665 = vmatpush1.msra.mxu0 0.0
    %666 = vmatprep.subr.mxu0 0.0
    %667 = vmatpush1.msra.mxu0 0.0
    %668 = vmatprep.subr.mxu0 0.0
    %669 = vmatpush1.msra.mxu0 0.0
    %670 = vmatprep.subr.mxu0 0.0
    %671 = vmatpush1.msra.mxu0 0.0
    %672 = vmatprep.subr.mxu0 0.0
    %673 = vmatpush1.msra.mxu0 0.0
    %674 = vmatprep.subr.mxu0 0.0
    %675 = vmatpush1.msra.mxu0 0.0
    %676 = vmatprep.subr.mxu0 0.0
    %677 = vmatpush1.msra.mxu0 0.0
    %678 = vmatprep.subr.mxu0 0.0
    %679 = vmatpush1.msra.mxu0 0.0
    %680 = vmatprep.subr.mxu0 0.0
    %681 = vmatpush1.msra.mxu0 0.0
    %682 = vmatprep.subr.mxu0 0.0
    %683 = vmatpush1.msra.mxu0 0.0
    %684 = vmatprep.subr.mxu0 0.0
    %685 = vmatpush1.msra.mxu0 0.0
    %686 = vmatprep.subr.mxu0 0.0
    %687 = vmatpush1.msra.mxu0 0.0
    %688 = vmatprep.subr.mxu0 0.0
    %689 = vmatpush1.msra.mxu0 0.0
    %690 = vmatprep.subr.mxu0 0.0
    %691 = vmatpush1.msra.mxu0 0.0
    %692 = vmatprep.subr.mxu0 0.0
    %693 = vmatpush1.msra.mxu0 0.0
    %694 = vmatprep.subr.mxu0 0.0
    %695 = vmatpush1.msra.mxu0 0.0
    %696 = vmatprep.subr.mxu0 0.0
    %697 = vmatpush1.msra.mxu0 0.0
    %698 = vmatprep.subr.mxu0 0.0
    %699 = vmatpush1.msra.mxu0 0.0
    %700 = vmatprep.subr.mxu0 0.0
    %701 = vmatpush1.msra.mxu0 0.0
    %702 = vmatprep.subr.mxu0 0.0
    %703 = vmatpush1.msra.mxu0 0.0
    %704 = vmatprep.mubr.f32.mxu0 0.0
    %705 = vmatmul.mubr.f32.gmra.mrb[0].mxu0 %v638
    %v706 = vpop.f32.mrb[0].mxu0
    %v707 = vadd.f32 0.0, %v706
    %v708 = vpop.f32.mrb[0].mxu0
    %709 = vdwg.mxu0
    %v710 = vsel %vm216, %v275, 0
    %712 = vmatprep.subr.mxu0 0.0
    %713 = vmatpush1.msra.mxu0 %v46
    %714 = vmatprep.subr.mxu0 0.0
    %715 = vmatpush1.msra.mxu0 0.0
    %716 = vmatprep.subr.mxu0 0.0
    %717 = vmatpush1.msra.mxu0 0.0
    %718 = vmatprep.subr.mxu0 0.0
    %719 = vmatpush1.msra.mxu0 0.0
    %720 = vmatprep.subr.mxu0 0.0
    %721 = vmatpush1.msra.mxu0 0.0
    %722 = vmatprep.subr.mxu0 0.0
    %723 = vmatpush1.msra.mxu0 0.0
    %724 = vmatprep.subr.mxu0 0.0
    %725 = vmatpush1.msra.mxu0 0.0
    %726 = vmatprep.subr.mxu0 0.0
    %727 = vmatpush1.msra.mxu0 0.0
    %728 = vmatprep.subr.mxu0 0.0
    %729 = vmatpush1.msra.mxu0 0.0
    %730 = vmatprep.subr.mxu0 0.0
    %731 = vmatpush1.msra.mxu0 0.0
    %732 = vmatprep.subr.mxu0 0.0
    %733 = vmatpush1.msra.mxu0 0.0
    %734 = vmatprep.subr.mxu0 0.0
    %735 = vmatpush1.msra.mxu0 0.0
    %736 = vmatprep.subr.mxu0 0.0
    %737 = vmatpush1.msra.mxu0 0.0
    %738 = vmatprep.subr.mxu0 0.0
    %739 = vmatpush1.msra.mxu0 0.0
    %740 = vmatprep.subr.mxu0 0.0
    %741 = vmatpush1.msra.mxu0 0.0
    %742 = vmatprep.subr.mxu0 0.0
    %743 = vmatpush1.msra.mxu0 0.0
    %744 = vmatprep.subr.mxu0 0.0
    %745 = vmatpush1.msra.mxu0 0.0
    %746 = vmatprep.subr.mxu0 0.0
    %747 = vmatpush1.msra.mxu0 0.0
    %748 = vmatprep.subr.mxu0 0.0
    %749 = vmatpush1.msra.mxu0 0.0
    %750 = vmatprep.subr.mxu0 0.0
    %751 = vmatpush1.msra.mxu0 0.0
    %752 = vmatprep.subr.mxu0 0.0
    %753 = vmatpush1.msra.mxu0 0.0
    %754 = vmatprep.subr.mxu0 0.0
    %755 = vmatpush1.msra.mxu0 0.0
    %756 = vmatprep.subr.mxu0 0.0
    %757 = vmatpush1.msra.mxu0 0.0
    %758 = vmatprep.subr.mxu0 0.0
    %759 = vmatpush1.msra.mxu0 0.0
    %760 = vmatprep.subr.mxu0 0.0
    %761 = vmatpush1.msra.mxu0 0.0
    %762 = vmatprep.subr.mxu0 0.0
    %763 = vmatpush1.msra.mxu0 0.0
    %764 = vmatprep.subr.mxu0 0.0
    %765 = vmatpush1.msra.mxu0 0.0
    %766 = vmatprep.subr.mxu0 0.0
    %767 = vmatpush1.msra.mxu0 0.0
    %768 = vmatprep.subr.mxu0 0.0
    %769 = vmatpush1.msra.mxu0 0.0
    %770 = vmatprep.subr.mxu0 0.0
    %771 = vmatpush1.msra.mxu0 0.0
    %772 = vmatprep.subr.mxu0 0.0
    %773 = vmatpush1.msra.mxu0 0.0
    %774 = vmatprep.subr.mxu0 0.0
    %775 = vmatpush1.msra.mxu0 0.0
    %776 = vmatprep.mubr.f32.mxu0 0.0
    %777 = vmatmul.mubr.f32.gmra.mrb[0].mxu0 %v710
    %v778 = vpop.f32.mrb[0].mxu0
    %v779 = vadd.f32 0.0, %v778
    %v780 = vpop.f32.mrb[0].mxu0
    %781 = vdwg.mxu0
    %v782 = vsel %vm216, %v277, 0
    %784 = vmatprep.subr.mxu0 0.0
    %785 = vmatpush1.msra.mxu0 %v47
    %786 = vmatprep.subr.mxu0 0.0
    %787 = vmatpush1.msra.mxu0 0.0
    %788 = vmatprep.subr.mxu0 0.0
    %789 = vmatpush1.msra.mxu0 0.0
    %790 = vmatprep.subr.mxu0 0.0
    %791 = vmatpush1.msra.mxu0 0.0
    %792 = vmatprep.subr.mxu0 0.0
    %793 = vmatpush1.msra.mxu0 0.0
    %794 = vmatprep.subr.mxu0 0.0
    %795 = vmatpush1.msra.mxu0 0.0
    %796 = vmatprep.subr.mxu0 0.0
    %797 = vmatpush1.msra.mxu0 0.0
    %798 = vmatprep.subr.mxu0 0.0
    %799 = vmatpush1.msra.mxu0 0.0
    %800 = vmatprep.subr.mxu0 0.0
    %801 = vmatpush1.msra.mxu0 0.0
    %802 = vmatprep.subr.mxu0 0.0
    %803 = vmatpush1.msra.mxu0 0.0
    %804 = vmatprep.subr.mxu0 0.0
    %805 = vmatpush1.msra.mxu0 0.0
    %806 = vmatprep.subr.mxu0 0.0
    %807 = vmatpush1.msra.mxu0 0.0
    %808 = vmatprep.subr.mxu0 0.0
    %809 = vmatpush1.msra.mxu0 0.0
    %810 = vmatprep.subr.mxu0 0.0
    %811 = vmatpush1.msra.mxu0 0.0
    %812 = vmatprep.subr.mxu0 0.0
    %813 = vmatpush1.msra.mxu0 0.0
    %814 = vmatprep.subr.mxu0 0.0
    %815 = vmatpush1.msra.mxu0 0.0
    %816 = vmatprep.subr.mxu0 0.0
    %817 = vmatpush1.msra.mxu0 0.0
    %818 = vmatprep.subr.mxu0 0.0
    %819 = vmatpush1.msra.mxu0 0.0
    %820 = vmatprep.subr.mxu0 0.0
    %821 = vmatpush1.msra.mxu0 0.0
    %822 = vmatprep.subr.mxu0 0.0
    %823 = vmatpush1.msra.mxu0 0.0
    %824 = vmatprep.subr.mxu0 0.0
    %825 = vmatpush1.msra.mxu0 0.0
    %826 = vmatprep.subr.mxu0 0.0
    %827 = vmatpush1.msra.mxu0 0.0
    %828 = vmatprep.subr.mxu0 0.0
    %829 = vmatpush1.msra.mxu0 0.0
    %830 = vmatprep.subr.mxu0 0.0
    %831 = vmatpush1.msra.mxu0 0.0
    %832 = vmatprep.subr.mxu0 0.0
    %833 = vmatpush1.msra.mxu0 0.0
    %834 = vmatprep.subr.mxu0 0.0
    %835 = vmatpush1.msra.mxu0 0.0
    %836 = vmatprep.subr.mxu0 0.0
    %837 = vmatpush1.msra.mxu0 0.0
    %838 = vmatprep.subr.mxu0 0.0
    %839 = vmatpush1.msra.mxu0 0.0
    %840 = vmatprep.subr.mxu0 0.0
    %841 = vmatpush1.msra.mxu0 0.0
    %842 = vmatprep.subr.mxu0 0.0
    %843 = vmatpush1.msra.mxu0 0.0
    %844 = vmatprep.subr.mxu0 0.0
    %845 = vmatpush1.msra.mxu0 0.0
    %846 = vmatprep.subr.mxu0 0.0
    %847 = vmatpush1.msra.mxu0 0.0
    %848 = vmatprep.mubr.f32.mxu0 0.0
    %849 = vmatmul.mubr.f32.gmra.mrb[0].mxu0 %v782
    %v850 = vpop.f32.mrb[0].mxu0
    %v851 = vadd.f32 0.0, %v850
    %v852 = vpop.f32.mrb[0].mxu0
    %853 = vdwg.mxu0
    %v854 = vld [vmem:[#allocation2 + $0x60] sm:$0xff]
    %v855 = vld [vmem:[#allocation2 + $0x68] sm:$0xff]
    %v856 = vld [vmem:[#allocation2 + $0x70] sm:$0xff]
    %v857 = vld [vmem:[#allocation2 + $0x78] sm:$0xff]
    %v866 = vrot.slane %v419, 7
    %vm867 = vcmask 1041409
    %v868 = vsel %vm867, %v866, %v347
    %v869 = vrot.slane %v491, 6
    %vm870 = vcmask 1042434
    %v871 = vsel %vm870, %v869, %v868
    %v872 = vrot.slane %v563, 5
    %vm873 = vcmask 1043459
    %v874 = vsel %vm873, %v872, %v871
    %v875 = vrot.slane %v635, 4
    %vm876 = vcmask 1044484
    %v877 = vsel %vm876, %v875, %v874
    %v878 = vrot.slane %v707, 3
    %vm879 = vcmask 1045509
    %v880 = vsel %vm879, %v878, %v877
    %v881 = vrot.slane %v779, 2
    %vm882 = vcmask 1046534
    %v883 = vsel %vm882, %v881, %v880
    %v884 = vrot.slane %v851, 1
    %vm885 = vcmask 1047559
    %v886 = vsel %vm885, %v884, %v883
    %v887 = vsel %vm59, %v886, 0
    %889 = vmatprep.subr.mxu0 0.0
    %890 = vmatpush1.msra.mxu0 %v854
    %891 = vmatprep.subr.mxu0 0.0
    %892 = vmatpush1.msra.mxu0 %v855
    %893 = vmatprep.subr.mxu0 0.0
    %894 = vmatpush1.msra.mxu0 %v856
    %895 = vmatprep.subr.mxu0 0.0
    %896 = vmatpush1.msra.mxu0 %v857
    %897 = vmatprep.subr.mxu0 0.0
    %898 = vmatpush1.msra.mxu0 0.0
    %899 = vmatprep.subr.mxu0 0.0
    %900 = vmatpush1.msra.mxu0 0.0
    %901 = vmatprep.subr.mxu0 0.0
    %902 = vmatpush1.msra.mxu0 0.0
    %903 = vmatprep.subr.mxu0 0.0
    %904 = vmatpush1.msra.mxu0 0.0
    %905 = vmatprep.subr.mxu0 0.0
    %906 = vmatpush1.msra.mxu0 0.0
    %907 = vmatprep.subr.mxu0 0.0
    %908 = vmatpush1.msra.mxu0 0.0
    %909 = vmatprep.subr.mxu0 0.0
    %910 = vmatpush1.msra.mxu0 0.0
    %911 = vmatprep.subr.mxu0 0.0
    %912 = vmatpush1.msra.mxu0 0.0
    %913 = vmatprep.subr.mxu0 0.0
    %914 = vmatpush1.msra.mxu0 0.0
    %915 = vmatprep.subr.mxu0 0.0
    %916 = vmatpush1.msra.mxu0 0.0
    %917 = vmatprep.subr.mxu0 0.0
    %918 = vmatpush1.msra.mxu0 0.0
    %919 = vmatprep.subr.mxu0 0.0
    %920 = vmatpush1.msra.mxu0 0.0
    %921 = vmatprep.subr.mxu0 0.0
    %922 = vmatpush1.msra.mxu0 0.0
    %923 = vmatprep.subr.mxu0 0.0
    %924 = vmatpush1.msra.mxu0 0.0
    %925 = vmatprep.subr.mxu0 0.0
    %926 = vmatpush1.msra.mxu0 0.0
    %927 = vmatprep.subr.mxu0 0.0
    %928 = vmatpush1.msra.mxu0 0.0
    %929 = vmatprep.subr.mxu0 0.0
    %930 = vmatpush1.msra.mxu0 0.0
    %931 = vmatprep.subr.mxu0 0.0
    %932 = vmatpush1.msra.mxu0 0.0
    %933 = vmatprep.subr.mxu0 0.0
    %934 = vmatpush1.msra.mxu0 0.0
    %935 = vmatprep.subr.mxu0 0.0
    %936 = vmatpush1.msra.mxu0 0.0
    %937 = vmatprep.subr.mxu0 0.0
    %938 = vmatpush1.msra.mxu0 0.0
    %939 = vmatprep.subr.mxu0 0.0
    %940 = vmatpush1.msra.mxu0 0.0
    %941 = vmatprep.subr.mxu0 0.0
    %942 = vmatpush1.msra.mxu0 0.0
    %943 = vmatprep.subr.mxu0 0.0
    %944 = vmatpush1.msra.mxu0 0.0
    %945 = vmatprep.subr.mxu0 0.0
    %946 = vmatpush1.msra.mxu0 0.0
    %947 = vmatprep.subr.mxu0 0.0
    %948 = vmatpush1.msra.mxu0 0.0
    %949 = vmatprep.subr.mxu0 0.0
    %950 = vmatpush1.msra.mxu0 0.0
    %951 = vmatprep.subr.mxu0 0.0
    %952 = vmatpush1.msra.mxu0 0.0
    %953 = vmatprep.mubr.f32.mxu0 0.0
    %954 = vmatmul.mubr.f32.gmra.mrb[0].mxu0 %v887
    %v955 = vpop.f32.mrb[0].mxu0
    %v956 = vadd.f32 0.0, %v955
    %v957 = vpop.f32.mrb[0].mxu0
    %958 = vdwg.mxu0
    %960 = vrot.lane.b32.xlu0 %v956, 8
    %v961 = vpop.permute.xlu0 %960
    %v963 = vadd.f32 %v130, %v961
    %v964 = vmax.f32 %v963, 0.0
    %v965 = vld [vmem:[#allocation2 + $0x40] sm:$0xff]
    %v966 = vld [vmem:[#allocation2 + $0x48] sm:$0xff]
    %v967 = vld [vmem:[#allocation2 + $0x50] sm:$0xff]
    %v968 = vld [vmem:[#allocation2 + $0x58] sm:$0xff]
    %v969 = vld [vmem:[#allocation2 + $0xa2] sm:$0x1]
    %v970 = vlaneseq
    %v971 = vshrl.u32 %v970, 7
    %v972 = vsub.s32 0, %v971
    %v973 = vrot.slane %v969, %v972
    %975 = vrot.lane.b32.xlu0 %v964, 120
    %v976 = vpop.permute.xlu0 %975
    %v977 = vsel %vm59, %v976, 0
    %979 = vmatprep.subr.mxu0 0.0
    %980 = vmatpush1.msra.mxu0 %v965
    %981 = vmatprep.subr.mxu0 0.0
    %982 = vmatpush1.msra.mxu0 %v966
    %983 = vmatprep.subr.mxu0 0.0
    %984 = vmatpush1.msra.mxu0 %v967
    %985 = vmatprep.subr.mxu0 0.0
    %986 = vmatpush1.msra.mxu0 %v968
    %987 = vmatprep.subr.mxu0 0.0
    %988 = vmatpush1.msra.mxu0 0.0
    %989 = vmatprep.subr.mxu0 0.0
    %990 = vmatpush1.msra.mxu0 0.0
    %991 = vmatprep.subr.mxu0 0.0
    %992 = vmatpush1.msra.mxu0 0.0
    %993 = vmatprep.subr.mxu0 0.0
    %994 = vmatpush1.msra.mxu0 0.0
    %995 = vmatprep.subr.mxu0 0.0
    %996 = vmatpush1.msra.mxu0 0.0
    %997 = vmatprep.subr.mxu0 0.0
    %998 = vmatpush1.msra.mxu0 0.0
    %999 = vmatprep.subr.mxu0 0.0
    %1000 = vmatpush1.msra.mxu0 0.0
    %1001 = vmatprep.subr.mxu0 0.0
    %1002 = vmatpush1.msra.mxu0 0.0
    %1003 = vmatprep.subr.mxu0 0.0
    %1004 = vmatpush1.msra.mxu0 0.0
    %1005 = vmatprep.subr.mxu0 0.0
    %1006 = vmatpush1.msra.mxu0 0.0
    %1007 = vmatprep.subr.mxu0 0.0
    %1008 = vmatpush1.msra.mxu0 0.0
    %1009 = vmatprep.subr.mxu0 0.0
    %1010 = vmatpush1.msra.mxu0 0.0
    %1011 = vmatprep.subr.mxu0 0.0
    %1012 = vmatpush1.msra.mxu0 0.0
    %1013 = vmatprep.subr.mxu0 0.0
    %1014 = vmatpush1.msra.mxu0 0.0
    %1015 = vmatprep.subr.mxu0 0.0
    %1016 = vmatpush1.msra.mxu0 0.0
    %1017 = vmatprep.subr.mxu0 0.0
    %1018 = vmatpush1.msra.mxu0 0.0
    %1019 = vmatprep.subr.mxu0 0.0
    %1020 = vmatpush1.msra.mxu0 0.0
    %1021 = vmatprep.subr.mxu0 0.0
    %1022 = vmatpush1.msra.mxu0 0.0
    %1023 = vmatprep.subr.mxu0 0.0
    %1024 = vmatpush1.msra.mxu0 0.0
    %1025 = vmatprep.subr.mxu0 0.0
    %1026 = vmatpush1.msra.mxu0 0.0
    %1027 = vmatprep.subr.mxu0 0.0
    %1028 = vmatpush1.msra.mxu0 0.0
    %1029 = vmatprep.subr.mxu0 0.0
    %1030 = vmatpush1.msra.mxu0 0.0
    %1031 = vmatprep.subr.mxu0 0.0
    %1032 = vmatpush1.msra.mxu0 0.0
    %1033 = vmatprep.subr.mxu0 0.0
    %1034 = vmatpush1.msra.mxu0 0.0
    %1035 = vmatprep.subr.mxu0 0.0
    %1036 = vmatpush1.msra.mxu0 0.0
    %1037 = vmatprep.subr.mxu0 0.0
    %1038 = vmatpush1.msra.mxu0 0.0
    %1039 = vmatprep.subr.mxu0 0.0
    %1040 = vmatpush1.msra.mxu0 0.0
    %1041 = vmatprep.subr.mxu0 0.0
    %1042 = vmatpush1.msra.mxu0 0.0
    %1043 = vmatprep.mubr.f32.mxu0 0.0
    %1044 = vmatmul.mubr.f32.gmra.mrb[0].mxu0 %v977
    %v1045 = vpop.f32.mrb[0].mxu0
    %v1046 = vadd.f32 %v973, %v1045
    %v1047 = vpop.f32.mrb[0].mxu0
    %1048 = vdwg.mxu0
    %1050 = vrot.lane.b32.xlu0 %v212, 120
    %v1051 = vpop.permute.xlu0 %1050
    %v1053 = vadd.f32 %v1046, %v1051
    %v1054 = vxor.u32 %v1053, 2147483648
    %v1055 = vmul.f32 %v1054, 1.442695
    %v1056 = vpow.pop %v1055
    %v1057 = vadd.f32 %v1056, 1.0
    %v1058 = vrcp.pop %v1057
    %v1059 = vmul.f32 1.0, %v1058
    %1060 = vrot.lane.b32.xlu0 %v212, 56
    %v1061 = vpop.permute.xlu0 %1060
    %v1063 = vmul.f32 %v1059, %v1061
    %1065 = vrot.lane.b32.xlu0 %v1063, 64
    %v1066 = vpop.permute.xlu0 %1065
    %v1068 = vadd.f32 %v1046, %v1066
    %v1069 = vtanh.pop %v1068
    %v1070 = vsub.f32 1.0, %v1059
    %1072 = vrot.lane.b32.xlu0 %v1069, 96
    %v1073 = vpop.permute.xlu0 %1072
    %v1075 = vmul.f32 %v1070, %v1073
    %1076 = vrot.lane.b32.xlu0 %v48, 32
    %v1077 = vpop.permute.xlu0 %1076
    %v1079 = vmul.f32 %v1059, %v1077
    %v1080 = vadd.f32 %v1075, %v1079
    %v1081 = vld [vmem:[#allocation2 + $0x80] sm:$0xff]
    %v1082 = vld [vmem:[#allocation2 + $0x88] sm:$0xff]
    %v1083 = vld [vmem:[#allocation2 + $0x90] sm:$0xff]
    %v1084 = vld [vmem:[#allocation2 + $0x98] sm:$0xff]
    %v1085 = vld [vmem:[#allocation2 + $0xa3] sm:$0x1]
    %v1086 = vlaneseq
    %v1087 = vshrl.u32 %v1086, 7
    %v1088 = vsub.s32 0, %v1087
    %v1089 = vrot.slane %v1085, %v1088
    %1091 = vrot.lane.b32.xlu0 %v1080, 96
    %v1092 = vpop.permute.xlu0 %1091
    %v1093 = vsel %vm59, %v1092, 0
    %1095 = vmatprep.subr.mxu0 0.0
    %1096 = vmatpush1.msra.mxu0 %v1081
    %1097 = vmatprep.subr.mxu0 0.0
    %1098 = vmatpush1.msra.mxu0 %v1082
    %1099 = vmatprep.subr.mxu0 0.0
    %1100 = vmatpush1.msra.mxu0 %v1083
    %1101 = vmatprep.subr.mxu0 0.0
    %1102 = vmatpush1.msra.mxu0 %v1084
    %1103 = vmatprep.subr.mxu0 0.0
    %1104 = vmatpush1.msra.mxu0 0.0
    %1105 = vmatprep.subr.mxu0 0.0
    %1106 = vmatpush1.msra.mxu0 0.0
    %1107 = vmatprep.subr.mxu0 0.0
    %1108 = vmatpush1.msra.mxu0 0.0
    %1109 = vmatprep.subr.mxu0 0.0
    %1110 = vmatpush1.msra.mxu0 0.0
    %1111 = vmatprep.subr.mxu0 0.0
    %1112 = vmatpush1.msra.mxu0 0.0
    %1113 = vmatprep.subr.mxu0 0.0
    %1114 = vmatpush1.msra.mxu0 0.0
    %1115 = vmatprep.subr.mxu0 0.0
    %1116 = vmatpush1.msra.mxu0 0.0
    %1117 = vmatprep.subr.mxu0 0.0
    %1118 = vmatpush1.msra.mxu0 0.0
    %1119 = vmatprep.subr.mxu0 0.0
    %1120 = vmatpush1.msra.mxu0 0.0
    %1121 = vmatprep.subr.mxu0 0.0
    %1122 = vmatpush1.msra.mxu0 0.0
    %1123 = vmatprep.subr.mxu0 0.0
    %1124 = vmatpush1.msra.mxu0 0.0
    %1125 = vmatprep.subr.mxu0 0.0
    %1126 = vmatpush1.msra.mxu0 0.0
    %1127 = vmatprep.subr.mxu0 0.0
    %1128 = vmatpush1.msra.mxu0 0.0
    %1129 = vmatprep.subr.mxu0 0.0
    %1130 = vmatpush1.msra.mxu0 0.0
    %1131 = vmatprep.subr.mxu0 0.0
    %1132 = vmatpush1.msra.mxu0 0.0
    %1133 = vmatprep.subr.mxu0 0.0
    %1134 = vmatpush1.msra.mxu0 0.0
    %1135 = vmatprep.subr.mxu0 0.0
    %1136 = vmatpush1.msra.mxu0 0.0
    %1137 = vmatprep.subr.mxu0 0.0
    %1138 = vmatpush1.msra.mxu0 0.0
    %1139 = vmatprep.subr.mxu0 0.0
    %1140 = vmatpush1.msra.mxu0 0.0
    %1141 = vmatprep.subr.mxu0 0.0
    %1142 = vmatpush1.msra.mxu0 0.0
    %1143 = vmatprep.subr.mxu0 0.0
    %1144 = vmatpush1.msra.mxu0 0.0
    %1145 = vmatprep.subr.mxu0 0.0
    %1146 = vmatpush1.msra.mxu0 0.0
    %1147 = vmatprep.subr.mxu0 0.0
    %1148 = vmatpush1.msra.mxu0 0.0
    %1149 = vmatprep.subr.mxu0 0.0
    %1150 = vmatpush1.msra.mxu0 0.0
    %1151 = vmatprep.subr.mxu0 0.0
    %1152 = vmatpush1.msra.mxu0 0.0
    %1153 = vmatprep.subr.mxu0 0.0
    %1154 = vmatpush1.msra.mxu0 0.0
    %1155 = vmatprep.subr.mxu0 0.0
    %1156 = vmatpush1.msra.mxu0 0.0
    %1157 = vmatprep.subr.mxu0 0.0
    %1158 = vmatpush1.msra.mxu0 0.0
    %1159 = vmatprep.mubr.f32.mxu0 0.0
    %1160 = vmatmul.mubr.f32.gmra.mrb[0].mxu0 %v1093
    %v1161 = vpop.f32.mrb[0].mxu0
    %v1162 = vadd.f32 %v1089, %v1161
    %v1163 = vpop.f32.mrb[0].mxu0
    %1164 = vdwg.mxu0
    %v1165 = vmax.f32 %v1162, 0.0
    %1166 = vrot.lane.b32.xlu0 %v227, 16
    %v1167 = vpop.permute.xlu0 %1166
    %vm1169 = vcmask 130048
    %v1170 = vsel %vm1169, %v1165, %v1167
    %vm1171 = vcmask 195584
    %v1172 = vsel %vm1171, %v1170, 0.0
    %1173 = vst [vmem:[%s4] sm:$0xff] %v1172
    %1175 = vst.msk [vmem:[%s5] sm:$0xff] %vm59, %v1092
    // Predicated region
    $region26: #{decoder_forward.1} parent=1 // pred_check
      _
    $region27: #{decoder_forward.1} parent=1 // pred_check_branch
      %1177 = sbr.rel (0) target = $region29
    $region28: #{decoder_forward.1} parent=1 // pred_region
      _
    $region29: #{decoder_forward.1} parent=1 // pred_fallthru
      _
    // Predicated region
    $region30: #{decoder_forward.1} parent=1 // pred_check
      _
    $region31: #{decoder_forward.1} parent=1 // pred_check_branch
      %1179 = sbr.rel (0) target = $region33
    $region32: #{decoder_forward.1} parent=1 // pred_region
      _
    $region33: #{decoder_forward.1} parent=1 // pred_fallthru
      _
    // Predicated region
    $region34: #{decoder_forward.1} parent=1 // pred_check
      _
    $region35: #{decoder_forward.1} parent=1 // pred_check_branch
      %1181 = sbr.rel (0) target = $region37
    $region36: #{decoder_forward.1} parent=1 // pred_region
      _
    $region37: #{decoder_forward.1} parent=1 // pred_fallthru
      _
    // Predicated region
    $region38: #{decoder_forward.1} parent=1 // pred_check
      _
    $region39: #{decoder_forward.1} parent=1 // pred_check_branch
      %1183 = sbr.rel (0) target = $region41
    $region40: #{decoder_forward.1} parent=1 // pred_region
      _
    $region41: #{decoder_forward.1} parent=1 // pred_fallthru
      _
    %1184 = vsyncpa [#allocation3], 1

</llo_original>
